<compile_context>
chip_gen: v5e
topology: v5e:2x2
jax: 0.10.0
libtpu: 0.0.40
codegen_flags: <defaults>
</compile_context>

<pallas_src>
import functools

import jax
import jax.numpy as jnp
from jax.experimental import pallas as pl
from jax.experimental.pallas import tpu as pltpu


def _block_kernel(x_ref, w1_ref, b1_ref, w2_ref, b2_ref, out_ref, *, H, W, C, N):
    """Whole batch in one step.

    x_ref  : (N*C, H*W) VMEM  input slab, row r = ci*N + n, lane = h*W + w
    w1_ref : (N*C, 9*C) VMEM  conv1 weight columns, lane = tap*C + delta,
                              value = w1[kh,kw, ci, (ci+delta)%C] for row ci*N+n
    b1_ref : (N*C, 1)   VMEM  conv1 bias column (b1[co] at row co*N+n)
    w2_ref : (N*C, 9*C) VMEM  conv2 weight columns (same layout as w1_ref)
    b2_ref : (N*C, 1)   VMEM  conv2 bias column
    out_ref: (N*C, H*W) VMEM  output slab, row r = co*N + n
    """
    HW = H * W
    NC = N * C

    # Lane-position helpers for the 3x3 SAME zero-padding masks, built once at
    # full slab shape (shared by all sublanes / both convs).
    lane = jax.lax.broadcasted_iota(jnp.int32, (NC, HW), 1)
    if (W & (W - 1)) == 0:                      # power-of-two W: bitwise mod
        ww = jnp.bitwise_and(lane, W - 1)
    else:
        ww = jax.lax.rem(lane, jnp.int32(W))

    masks = {}
    for dh in (-1, 0, 1):
        for dw in (-1, 0, 1):
            conds = []
            if dh == -1:
                conds.append(lane >= W)
            elif dh == 1:
                conds.append(lane < (H - 1) * W)
            if dw == -1:
                conds.append(ww >= 1)
            elif dw == 1:
                conds.append(ww < W - 1)
            m = None
            for c in conds:
                m = c if m is None else (m & c)
            masks[(dh, dw)] = m                 # None for the centre tap

    def conv3x3(slab, w_ref, b_ref):
        # One lane-roll + one mask per tap on the full slab, then 4 broadcast
        # multiply-accumulates (one per channel-offset delta).  The delta sums
        # are realigned to their output channels with 3 sublane rolls at the
        # end (roll by delta*N rotates channels, keeps the image index).
        s_delta = [None] * C
        for kh in range(3):
            for kw in range(3):
                dh, dw = kh - 1, kw - 1
                d = dh * W + dw                 # flat-index source shift
                src = slab
                if d != 0:
                    # result[p] = slab[p + d]  (XLU lane rotation)
                    src = pltpu.roll(src, shift=(-d) % HW, axis=1)
                m = masks[(dh, dw)]
                if m is not None:
                    src = jnp.where(m, src, 0.0)
                tap = kh * 3 + kw
                for delta in range(C):
                    idx = tap * C + delta
                    col = w_ref[:, idx:idx + 1]         # (NC, 1) weight column
                    term = col * src                    # lane-broadcast MAC
                    s_delta[delta] = (term if s_delta[delta] is None
                                      else s_delta[delta] + term)
        acc = s_delta[0]
        for delta in range(1, C):
            acc = acc + pltpu.roll(s_delta[delta], shift=delta * N, axis=0)
        return acc + b_ref[...]                 # (NC,1) bias broadcast

    x = x_ref[...]                              # full (8, 256) load
    y1 = jnp.maximum(conv3x3(x, w1_ref, b1_ref), 0.0)
    y2 = conv3x3(y1, w2_ref, b2_ref)
    # Residual add + final ReLU; single full, unmasked slab store.
    out_ref[...] = jnp.maximum(x + y2, 0.0)


def _weight_columns(w_hwio, N):
    """(3,3,Cin,Cout) HWIO -> (N*Cin, 9*Cout) column table for the kernel.

    Column (tap*C + delta), row (ci*N + n) holds w[kh, kw, ci, (ci+delta)%C].
    """
    C = w_hwio.shape[2]
    w_t = w_hwio.astype(jnp.float32).reshape(9, C, C)       # (tap, ci, co)
    ci = jnp.arange(C)
    delta = jnp.arange(C)
    ci_b = jnp.broadcast_to(ci[None, :], (C, C))             # (delta, ci)
    co_b = (ci_b + delta[:, None]) % C                        # (delta, ci)
    wp = w_t[:, ci_b, co_b]                                   # (tap, delta, ci)
    wp = jnp.repeat(wp, N, axis=2)                            # (tap, delta, ci*N+n)
    return wp.reshape(9 * C, N * C).T                         # (NC, 9*C)


def block_forward(x_nchw, w1, b1, w2, b2):
    """relu(x + conv2(relu(conv1(x)))) with 3x3 'same' convolutions.

    x_nchw: (N, C, H, W) float32; w1/w2: (3, 3, C, C) HWIO; b1/b2: (C,).
    Returns (N, C, H, W) float32.
    """
    N, C, H, W = x_nchw.shape
    HW, NC = H * W, N * C
    WCOLS = 9 * C

    # Host-side layout plumbing only (tiny arrays): channel-major slab so the
    # kernel's sublane rolls rotate channels, not images.
    x_slab = jnp.transpose(x_nchw.astype(jnp.float32), (1, 0, 2, 3)).reshape(NC, HW)
    w1c = _weight_columns(w1, N)
    w2c = _weight_columns(w2, N)
    b1c = jnp.repeat(b1.astype(jnp.float32), N).reshape(NC, 1)
    b2c = jnp.repeat(b2.astype(jnp.float32), N).reshape(NC, 1)

    kernel = functools.partial(_block_kernel, H=H, W=W, C=C, N=N)

    # Single grid step over the whole batch: per-step compute (~100s of
    # cycles) is far below the ~0.35us/step pipeline overhead, so splitting
    # the batch (or megacore-sharding it on v7x) would be pure overhead.
    out_slab = pl.pallas_call(
        kernel,
        out_shape=jax.ShapeDtypeStruct((NC, HW), jnp.float32),
        grid=(1,),
        in_specs=[
            pl.BlockSpec((NC, HW), lambda i: (0, 0)),      # x slab
            pl.BlockSpec((NC, WCOLS), lambda i: (0, 0)),   # conv1 weight cols
            pl.BlockSpec((NC, 1), lambda i: (0, 0)),       # conv1 bias col
            pl.BlockSpec((NC, WCOLS), lambda i: (0, 0)),   # conv2 weight cols
            pl.BlockSpec((NC, 1), lambda i: (0, 0)),       # conv2 bias col
        ],
        out_specs=pl.BlockSpec((NC, HW), lambda i: (0, 0)),
        compiler_params=pltpu.CompilerParams(
            dimension_semantics=("arbitrary",)),
    )(x_slab, w1c, b1c, w2c, b2c)

    return jnp.transpose(out_slab.reshape(C, N, H, W), (1, 0, 2, 3))


def _reference(x_nchw, w1, b1, w2, b2):
    """Pure-JAX reference (XLA convs) for correctness checking."""
    x = jnp.transpose(x_nchw, (0, 2, 3, 1))
    dn = jax.lax.conv_dimension_numbers(x.shape, w1.shape,
                                        ('NHWC', 'HWIO', 'NHWC'))
    y = jax.lax.conv_general_dilated(x, w1, (1, 1), 'SAME',
                                     dimension_numbers=dn) + b1
    y = jnp.maximum(y, 0.0)
    y = jax.lax.conv_general_dilated(y, w2, (1, 1), 'SAME',
                                     dimension_numbers=dn) + b2
    out = jnp.maximum(x + y, 0.0)
    return jnp.transpose(out, (0, 3, 1, 2))


if __name__ == "__main__":
    # Shapes consistent with Block(channels=4) on a 2x4x16x16 input.
    N, C, H, W = 2, 4, 16, 16

    key = jax.random.PRNGKey(0)
    kx, k1, kb1, k2, kb2 = jax.random.split(key, 5)

    x = jax.random.normal(kx, (N, C, H, W), dtype=jnp.float32)
    # "Conv2d(C, C, 3, padding=1)" parameters in HWIO layout.
    w1 = jax.random.normal(k1, (3, 3, C, C), dtype=jnp.float32) * 0.1
    b1 = jax.random.normal(kb1, (C,), dtype=jnp.float32) * 0.1
    w2 = jax.random.normal(k2, (3, 3, C, C), dtype=jnp.float32) * 0.1
    b2 = jax.random.normal(kb2, (C,), dtype=jnp.float32) * 0.1

    out = jax.block_until_ready(block_forward(x, w1, b1, w2, b2))
    ref = jax.block_until_ready(_reference(x, w1, b1, w2, b2))

    assert out.shape == (N, C, H, W)
    err = jnp.max(jnp.abs(out - ref))
    assert jnp.allclose(out, ref, atol=1e-4, rtol=1e-4), f"max abs err {err}"

    print("KERNEL_OK")
</pallas_src>

<mosaic_0001>
module attributes {stable_mosaic.version = 11 : i64} {
  func.func @_block_kernel(%arg0: i32, %arg1: memref<8x256xf32, #tpu.memory_space<vmem>>, %arg2: memref<8x36xf32, #tpu.memory_space<vmem>>, %arg3: memref<8x1xf32, #tpu.memory_space<vmem>>, %arg4: memref<8x36xf32, #tpu.memory_space<vmem>>, %arg5: memref<8x1xf32, #tpu.memory_space<vmem>>, %arg6: memref<8x256xf32, #tpu.memory_space<vmem>>) attributes {dimension_semantics = [#tpu.dimension_semantics<arbitrary>], iteration_bounds = array<i64: 1>, scalar_prefetch = 0 : i64, scratch_operands = 0 : i64, tpu.core_type = #tpu.core_type<tc>, window_params = [{pipeline_mode = #tpu.pipeline_mode<synchronous>, transform_indices = @transform_0, window_bounds = array<i64: 8, 256>}, {pipeline_mode = #tpu.pipeline_mode<synchronous>, transform_indices = @transform_1, window_bounds = array<i64: 8, 36>}, {pipeline_mode = #tpu.pipeline_mode<synchronous>, transform_indices = @transform_2, window_bounds = array<i64: 8, 1>}, {pipeline_mode = #tpu.pipeline_mode<synchronous>, transform_indices = @transform_3, window_bounds = array<i64: 8, 36>}, {pipeline_mode = #tpu.pipeline_mode<synchronous>, transform_indices = @transform_4, window_bounds = array<i64: 8, 1>}, {pipeline_mode = #tpu.pipeline_mode<synchronous>, transform_indices = @transform_5, window_bounds = array<i64: 8, 256>}]} {
    %0 = tpu.iota {dimensions = array<i32: 1>} : vector<8x256xi32>
    %c15_i32 = arith.constant 15 : i32
    %1 = vector.broadcast %c15_i32 : i32 to vector<8x256xi32>
    %2 = arith.andi %0, %1 : vector<8x256xi32>
    %c16_i32 = arith.constant 16 : i32
    %3 = vector.broadcast %c16_i32 : i32 to vector<8x256xi32>
    %4 = arith.cmpi sge, %0, %3 : vector<8x256xi32>
    %c1_i32 = arith.constant 1 : i32
    %5 = vector.broadcast %c1_i32 : i32 to vector<8x256xi32>
    %6 = arith.cmpi sge, %2, %5 : vector<8x256xi32>
    %7 = arith.andi %4, %6 : vector<8x256xi1>
    %c16_i32_0 = arith.constant 16 : i32
    %8 = vector.broadcast %c16_i32_0 : i32 to vector<8x256xi32>
    %9 = arith.cmpi sge, %0, %8 : vector<8x256xi32>
    %c16_i32_1 = arith.constant 16 : i32
    %10 = vector.broadcast %c16_i32_1 : i32 to vector<8x256xi32>
    %11 = arith.cmpi sge, %0, %10 : vector<8x256xi32>
    %c15_i32_2 = arith.constant 15 : i32
    %12 = vector.broadcast %c15_i32_2 : i32 to vector<8x256xi32>
    %13 = arith.cmpi slt, %2, %12 : vector<8x256xi32>
    %14 = arith.andi %11, %13 : vector<8x256xi1>
    %c1_i32_3 = arith.constant 1 : i32
    %15 = vector.broadcast %c1_i32_3 : i32 to vector<8x256xi32>
    %16 = arith.cmpi sge, %2, %15 : vector<8x256xi32>
    %c15_i32_4 = arith.constant 15 : i32
    %17 = vector.broadcast %c15_i32_4 : i32 to vector<8x256xi32>
    %18 = arith.cmpi slt, %2, %17 : vector<8x256xi32>
    %c240_i32 = arith.constant 240 : i32
    %19 = vector.broadcast %c240_i32 : i32 to vector<8x256xi32>
    %20 = arith.cmpi slt, %0, %19 : vector<8x256xi32>
    %c1_i32_5 = arith.constant 1 : i32
    %21 = vector.broadcast %c1_i32_5 : i32 to vector<8x256xi32>
    %22 = arith.cmpi sge, %2, %21 : vector<8x256xi32>
    %23 = arith.andi %20, %22 : vector<8x256xi1>
    %c240_i32_6 = arith.constant 240 : i32
    %24 = vector.broadcast %c240_i32_6 : i32 to vector<8x256xi32>
    %25 = arith.cmpi slt, %0, %24 : vector<8x256xi32>
    %c240_i32_7 = arith.constant 240 : i32
    %26 = vector.broadcast %c240_i32_7 : i32 to vector<8x256xi32>
    %27 = arith.cmpi slt, %0, %26 : vector<8x256xi32>
    %c15_i32_8 = arith.constant 15 : i32
    %28 = vector.broadcast %c15_i32_8 : i32 to vector<8x256xi32>
    %29 = arith.cmpi slt, %2, %28 : vector<8x256xi32>
    %30 = arith.andi %27, %29 : vector<8x256xi1>
    %c0 = arith.constant 0 : index
    %c0_9 = arith.constant 0 : index
    %31 = vector.load %arg1[%c0, %c0_9] : memref<8x256xf32, #tpu.memory_space<vmem>>, vector<8x256xf32>
    %c17_i32 = arith.constant 17 : i32
    %32 = tpu.dynamic_rotate %31 by %c17_i32 dim 1 : vector<8x256xf32>, i32 -> vector<8x256xf32>
    %cst = arith.constant 0.000000e+00 : f32
    %33 = vector.broadcast %cst : f32 to vector<8x256xf32>
    %34 = arith.select %7, %32, %33 : vector<8x256xi1>, vector<8x256xf32>
    %c0_10 = arith.constant 0 : index
    %c0_11 = arith.constant 0 : index
    %35 = vector.load %arg2[%c0_10, %c0_11] : memref<8x36xf32, #tpu.memory_space<vmem>>, vector<8x1xf32>
    %36 = vector.broadcast %35 : vector<8x1xf32> to vector<8x256xf32>
    %37 = arith.mulf %36, %34 : vector<8x256xf32>
    %c0_12 = arith.constant 0 : index
    %c1 = arith.constant 1 : index
    %38 = vector.load %arg2[%c0_12, %c1] : memref<8x36xf32, #tpu.memory_space<vmem>>, vector<8x1xf32>
    %39 = vector.broadcast %38 : vector<8x1xf32> to vector<8x256xf32>
    %40 = arith.mulf %39, %34 : vector<8x256xf32>
    %c0_13 = arith.constant 0 : index
    %c2 = arith.constant 2 : index
    %41 = vector.load %arg2[%c0_13, %c2] : memref<8x36xf32, #tpu.memory_space<vmem>>, vector<8x1xf32>
    %42 = vector.broadcast %41 : vector<8x1xf32> to vector<8x256xf32>
    %43 = arith.mulf %42, %34 : vector<8x256xf32>
    %c0_14 = arith.constant 0 : index
    %c3 = arith.constant 3 : index
    %44 = vector.load %arg2[%c0_14, %c3] : memref<8x36xf32, #tpu.memory_space<vmem>>, vector<8x1xf32>
    %45 = vector.broadcast %44 : vector<8x1xf32> to vector<8x256xf32>
    %46 = arith.mulf %45, %34 : vector<8x256xf32>
    %c16_i32_15 = arith.constant 16 : i32
    %47 = tpu.dynamic_rotate %31 by %c16_i32_15 dim 1 : vector<8x256xf32>, i32 -> vector<8x256xf32>
    %cst_16 = arith.constant 0.000000e+00 : f32
    %48 = vector.broadcast %cst_16 : f32 to vector<8x256xf32>
    %49 = arith.select %9, %47, %48 : vector<8x256xi1>, vector<8x256xf32>
    %c0_17 = arith.constant 0 : index
    %c4 = arith.constant 4 : index
    %50 = vector.load %arg2[%c0_17, %c4] : memref<8x36xf32, #tpu.memory_space<vmem>>, vector<8x1xf32>
    %51 = vector.broadcast %50 : vector<8x1xf32> to vector<8x256xf32>
    %52 = arith.mulf %51, %49 : vector<8x256xf32>
    %53 = arith.addf %37, %52 : vector<8x256xf32>
    %c0_18 = arith.constant 0 : index
    %c5 = arith.constant 5 : index
    %54 = vector.load %arg2[%c0_18, %c5] : memref<8x36xf32, #tpu.memory_space<vmem>>, vector<8x1xf32>
    %55 = vector.broadcast %54 : vector<8x1xf32> to vector<8x256xf32>
    %56 = arith.mulf %55, %49 : vector<8x256xf32>
    %57 = arith.addf %40, %56 : vector<8x256xf32>
    %c0_19 = arith.constant 0 : index
    %c6 = arith.constant 6 : index
    %58 = vector.load %arg2[%c0_19, %c6] : memref<8x36xf32, #tpu.memory_space<vmem>>, vector<8x1xf32>
    %59 = vector.broadcast %58 : vector<8x1xf32> to vector<8x256xf32>
    %60 = arith.mulf %59, %49 : vector<8x256xf32>
    %61 = arith.addf %43, %60 : vector<8x256xf32>
    %c0_20 = arith.constant 0 : index
    %c7 = arith.constant 7 : index
    %62 = vector.load %arg2[%c0_20, %c7] : memref<8x36xf32, #tpu.memory_space<vmem>>, vector<8x1xf32>
    %63 = vector.broadcast %62 : vector<8x1xf32> to vector<8x256xf32>
    %64 = arith.mulf %63, %49 : vector<8x256xf32>
    %65 = arith.addf %46, %64 : vector<8x256xf32>
    %c15_i32_21 = arith.constant 15 : i32
    %66 = tpu.dynamic_rotate %31 by %c15_i32_21 dim 1 : vector<8x256xf32>, i32 -> vector<8x256xf32>
    %cst_22 = arith.constant 0.000000e+00 : f32
    %67 = vector.broadcast %cst_22 : f32 to vector<8x256xf32>
    %68 = arith.select %14, %66, %67 : vector<8x256xi1>, vector<8x256xf32>
    %c0_23 = arith.constant 0 : index
    %c8 = arith.constant 8 : index
    %69 = vector.load %arg2[%c0_23, %c8] : memref<8x36xf32, #tpu.memory_space<vmem>>, vector<8x1xf32>
    %70 = vector.broadcast %69 : vector<8x1xf32> to vector<8x256xf32>
    %71 = arith.mulf %70, %68 : vector<8x256xf32>
    %72 = arith.addf %53, %71 : vector<8x256xf32>
    %c0_24 = arith.constant 0 : index
    %c9 = arith.constant 9 : index
    %73 = vector.load %arg2[%c0_24, %c9] : memref<8x36xf32, #tpu.memory_space<vmem>>, vector<8x1xf32>
    %74 = vector.broadcast %73 : vector<8x1xf32> to vector<8x256xf32>
    %75 = arith.mulf %74, %68 : vector<8x256xf32>
    %76 = arith.addf %57, %75 : vector<8x256xf32>
    %c0_25 = arith.constant 0 : index
    %c10 = arith.constant 10 : index
    %77 = vector.load %arg2[%c0_25, %c10] : memref<8x36xf32, #tpu.memory_space<vmem>>, vector<8x1xf32>
    %78 = vector.broadcast %77 : vector<8x1xf32> to vector<8x256xf32>
    %79 = arith.mulf %78, %68 : vector<8x256xf32>
    %80 = arith.addf %61, %79 : vector<8x256xf32>
    %c0_26 = arith.constant 0 : index
    %c11 = arith.constant 11 : index
    %81 = vector.load %arg2[%c0_26, %c11] : memref<8x36xf32, #tpu.memory_space<vmem>>, vector<8x1xf32>
    %82 = vector.broadcast %81 : vector<8x1xf32> to vector<8x256xf32>
    %83 = arith.mulf %82, %68 : vector<8x256xf32>
    %84 = arith.addf %65, %83 : vector<8x256xf32>
    %c1_i32_27 = arith.constant 1 : i32
    %85 = tpu.dynamic_rotate %31 by %c1_i32_27 dim 1 : vector<8x256xf32>, i32 -> vector<8x256xf32>
    %cst_28 = arith.constant 0.000000e+00 : f32
    %86 = vector.broadcast %cst_28 : f32 to vector<8x256xf32>
    %87 = arith.select %16, %85, %86 : vector<8x256xi1>, vector<8x256xf32>
    %c0_29 = arith.constant 0 : index
    %c12 = arith.constant 12 : index
    %88 = vector.load %arg2[%c0_29, %c12] : memref<8x36xf32, #tpu.memory_space<vmem>>, vector<8x1xf32>
    %89 = vector.broadcast %88 : vector<8x1xf32> to vector<8x256xf32>
    %90 = arith.mulf %89, %87 : vector<8x256xf32>
    %91 = arith.addf %72, %90 : vector<8x256xf32>
    %c0_30 = arith.constant 0 : index
    %c13 = arith.constant 13 : index
    %92 = vector.load %arg2[%c0_30, %c13] : memref<8x36xf32, #tpu.memory_space<vmem>>, vector<8x1xf32>
    %93 = vector.broadcast %92 : vector<8x1xf32> to vector<8x256xf32>
    %94 = arith.mulf %93, %87 : vector<8x256xf32>
    %95 = arith.addf %76, %94 : vector<8x256xf32>
    %c0_31 = arith.constant 0 : index
    %c14 = arith.constant 14 : index
    %96 = vector.load %arg2[%c0_31, %c14] : memref<8x36xf32, #tpu.memory_space<vmem>>, vector<8x1xf32>
    %97 = vector.broadcast %96 : vector<8x1xf32> to vector<8x256xf32>
    %98 = arith.mulf %97, %87 : vector<8x256xf32>
    %99 = arith.addf %80, %98 : vector<8x256xf32>
    %c0_32 = arith.constant 0 : index
    %c15 = arith.constant 15 : index
    %100 = vector.load %arg2[%c0_32, %c15] : memref<8x36xf32, #tpu.memory_space<vmem>>, vector<8x1xf32>
    %101 = vector.broadcast %100 : vector<8x1xf32> to vector<8x256xf32>
    %102 = arith.mulf %101, %87 : vector<8x256xf32>
    %103 = arith.addf %84, %102 : vector<8x256xf32>
    %c0_33 = arith.constant 0 : index
    %c16 = arith.constant 16 : index
    %104 = vector.load %arg2[%c0_33, %c16] : memref<8x36xf32, #tpu.memory_space<vmem>>, vector<8x1xf32>
    %105 = vector.broadcast %104 : vector<8x1xf32> to vector<8x256xf32>
    %106 = arith.mulf %105, %31 : vector<8x256xf32>
    %107 = arith.addf %91, %106 : vector<8x256xf32>
    %c0_34 = arith.constant 0 : index
    %c17 = arith.constant 17 : index
    %108 = vector.load %arg2[%c0_34, %c17] : memref<8x36xf32, #tpu.memory_space<vmem>>, vector<8x1xf32>
    %109 = vector.broadcast %108 : vector<8x1xf32> to vector<8x256xf32>
    %110 = arith.mulf %109, %31 : vector<8x256xf32>
    %111 = arith.addf %95, %110 : vector<8x256xf32>
    %c0_35 = arith.constant 0 : index
    %c18 = arith.constant 18 : index
    %112 = vector.load %arg2[%c0_35, %c18] : memref<8x36xf32, #tpu.memory_space<vmem>>, vector<8x1xf32>
    %113 = vector.broadcast %112 : vector<8x1xf32> to vector<8x256xf32>
    %114 = arith.mulf %113, %31 : vector<8x256xf32>
    %115 = arith.addf %99, %114 : vector<8x256xf32>
    %c0_36 = arith.constant 0 : index
    %c19 = arith.constant 19 : index
    %116 = vector.load %arg2[%c0_36, %c19] : memref<8x36xf32, #tpu.memory_space<vmem>>, vector<8x1xf32>
    %117 = vector.broadcast %116 : vector<8x1xf32> to vector<8x256xf32>
    %118 = arith.mulf %117, %31 : vector<8x256xf32>
    %119 = arith.addf %103, %118 : vector<8x256xf32>
    %c255_i32 = arith.constant 255 : i32
    %120 = tpu.dynamic_rotate %31 by %c255_i32 dim 1 : vector<8x256xf32>, i32 -> vector<8x256xf32>
    %cst_37 = arith.constant 0.000000e+00 : f32
    %121 = vector.broadcast %cst_37 : f32 to vector<8x256xf32>
    %122 = arith.select %18, %120, %121 : vector<8x256xi1>, vector<8x256xf32>
    %c0_38 = arith.constant 0 : index
    %c20 = arith.constant 20 : index
    %123 = vector.load %arg2[%c0_38, %c20] : memref<8x36xf32, #tpu.memory_space<vmem>>, vector<8x1xf32>
    %124 = vector.broadcast %123 : vector<8x1xf32> to vector<8x256xf32>
    %125 = arith.mulf %124, %122 : vector<8x256xf32>
    %126 = arith.addf %107, %125 : vector<8x256xf32>
    %c0_39 = arith.constant 0 : index
    %c21 = arith.constant 21 : index
    %127 = vector.load %arg2[%c0_39, %c21] : memref<8x36xf32, #tpu.memory_space<vmem>>, vector<8x1xf32>
    %128 = vector.broadcast %127 : vector<8x1xf32> to vector<8x256xf32>
    %129 = arith.mulf %128, %122 : vector<8x256xf32>
    %130 = arith.addf %111, %129 : vector<8x256xf32>
    %c0_40 = arith.constant 0 : index
    %c22 = arith.constant 22 : index
    %131 = vector.load %arg2[%c0_40, %c22] : memref<8x36xf32, #tpu.memory_space<vmem>>, vector<8x1xf32>
    %132 = vector.broadcast %131 : vector<8x1xf32> to vector<8x256xf32>
    %133 = arith.mulf %132, %122 : vector<8x256xf32>
    %134 = arith.addf %115, %133 : vector<8x256xf32>
    %c0_41 = arith.constant 0 : index
    %c23 = arith.constant 23 : index
    %135 = vector.load %arg2[%c0_41, %c23] : memref<8x36xf32, #tpu.memory_space<vmem>>, vector<8x1xf32>
    %136 = vector.broadcast %135 : vector<8x1xf32> to vector<8x256xf32>
    %137 = arith.mulf %136, %122 : vector<8x256xf32>
    %138 = arith.addf %119, %137 : vector<8x256xf32>
    %c241_i32 = arith.constant 241 : i32
    %139 = tpu.dynamic_rotate %31 by %c241_i32 dim 1 : vector<8x256xf32>, i32 -> vector<8x256xf32>
    %cst_42 = arith.constant 0.000000e+00 : f32
    %140 = vector.broadcast %cst_42 : f32 to vector<8x256xf32>
    %141 = arith.select %23, %139, %140 : vector<8x256xi1>, vector<8x256xf32>
    %c0_43 = arith.constant 0 : index
    %c24 = arith.constant 24 : index
    %142 = vector.load %arg2[%c0_43, %c24] : memref<8x36xf32, #tpu.memory_space<vmem>>, vector<8x1xf32>
    %143 = vector.broadcast %142 : vector<8x1xf32> to vector<8x256xf32>
    %144 = arith.mulf %143, %141 : vector<8x256xf32>
    %145 = arith.addf %126, %144 : vector<8x256xf32>
    %c0_44 = arith.constant 0 : index
    %c25 = arith.constant 25 : index
    %146 = vector.load %arg2[%c0_44, %c25] : memref<8x36xf32, #tpu.memory_space<vmem>>, vector<8x1xf32>
    %147 = vector.broadcast %146 : vector<8x1xf32> to vector<8x256xf32>
    %148 = arith.mulf %147, %141 : vector<8x256xf32>
    %149 = arith.addf %130, %148 : vector<8x256xf32>
    %c0_45 = arith.constant 0 : index
    %c26 = arith.constant 26 : index
    %150 = vector.load %arg2[%c0_45, %c26] : memref<8x36xf32, #tpu.memory_space<vmem>>, vector<8x1xf32>
    %151 = vector.broadcast %150 : vector<8x1xf32> to vector<8x256xf32>
    %152 = arith.mulf %151, %141 : vector<8x256xf32>
    %153 = arith.addf %134, %152 : vector<8x256xf32>
    %c0_46 = arith.constant 0 : index
    %c27 = arith.constant 27 : index
    %154 = vector.load %arg2[%c0_46, %c27] : memref<8x36xf32, #tpu.memory_space<vmem>>, vector<8x1xf32>
    %155 = vector.broadcast %154 : vector<8x1xf32> to vector<8x256xf32>
    %156 = arith.mulf %155, %141 : vector<8x256xf32>
    %157 = arith.addf %138, %156 : vector<8x256xf32>
    %c240_i32_47 = arith.constant 240 : i32
    %158 = tpu.dynamic_rotate %31 by %c240_i32_47 dim 1 : vector<8x256xf32>, i32 -> vector<8x256xf32>
    %cst_48 = arith.constant 0.000000e+00 : f32
    %159 = vector.broadcast %cst_48 : f32 to vector<8x256xf32>
    %160 = arith.select %25, %158, %159 : vector<8x256xi1>, vector<8x256xf32>
    %c0_49 = arith.constant 0 : index
    %c28 = arith.constant 28 : index
    %161 = vector.load %arg2[%c0_49, %c28] : memref<8x36xf32, #tpu.memory_space<vmem>>, vector<8x1xf32>
    %162 = vector.broadcast %161 : vector<8x1xf32> to vector<8x256xf32>
    %163 = arith.mulf %162, %160 : vector<8x256xf32>
    %164 = arith.addf %145, %163 : vector<8x256xf32>
    %c0_50 = arith.constant 0 : index
    %c29 = arith.constant 29 : index
    %165 = vector.load %arg2[%c0_50, %c29] : memref<8x36xf32, #tpu.memory_space<vmem>>, vector<8x1xf32>
    %166 = vector.broadcast %165 : vector<8x1xf32> to vector<8x256xf32>
    %167 = arith.mulf %166, %160 : vector<8x256xf32>
    %168 = arith.addf %149, %167 : vector<8x256xf32>
    %c0_51 = arith.constant 0 : index
    %c30 = arith.constant 30 : index
    %169 = vector.load %arg2[%c0_51, %c30] : memref<8x36xf32, #tpu.memory_space<vmem>>, vector<8x1xf32>
    %170 = vector.broadcast %169 : vector<8x1xf32> to vector<8x256xf32>
    %171 = arith.mulf %170, %160 : vector<8x256xf32>
    %172 = arith.addf %153, %171 : vector<8x256xf32>
    %c0_52 = arith.constant 0 : index
    %c31 = arith.constant 31 : index
    %173 = vector.load %arg2[%c0_52, %c31] : memref<8x36xf32, #tpu.memory_space<vmem>>, vector<8x1xf32>
    %174 = vector.broadcast %173 : vector<8x1xf32> to vector<8x256xf32>
    %175 = arith.mulf %174, %160 : vector<8x256xf32>
    %176 = arith.addf %157, %175 : vector<8x256xf32>
    %c239_i32 = arith.constant 239 : i32
    %177 = tpu.dynamic_rotate %31 by %c239_i32 dim 1 : vector<8x256xf32>, i32 -> vector<8x256xf32>
    %cst_53 = arith.constant 0.000000e+00 : f32
    %178 = vector.broadcast %cst_53 : f32 to vector<8x256xf32>
    %179 = arith.select %30, %177, %178 : vector<8x256xi1>, vector<8x256xf32>
    %c0_54 = arith.constant 0 : index
    %c32 = arith.constant 32 : index
    %180 = vector.load %arg2[%c0_54, %c32] : memref<8x36xf32, #tpu.memory_space<vmem>>, vector<8x1xf32>
    %181 = vector.broadcast %180 : vector<8x1xf32> to vector<8x256xf32>
    %182 = arith.mulf %181, %179 : vector<8x256xf32>
    %183 = arith.addf %164, %182 : vector<8x256xf32>
    %c0_55 = arith.constant 0 : index
    %c33 = arith.constant 33 : index
    %184 = vector.load %arg2[%c0_55, %c33] : memref<8x36xf32, #tpu.memory_space<vmem>>, vector<8x1xf32>
    %185 = vector.broadcast %184 : vector<8x1xf32> to vector<8x256xf32>
    %186 = arith.mulf %185, %179 : vector<8x256xf32>
    %187 = arith.addf %168, %186 : vector<8x256xf32>
    %c0_56 = arith.constant 0 : index
    %c34 = arith.constant 34 : index
    %188 = vector.load %arg2[%c0_56, %c34] : memref<8x36xf32, #tpu.memory_space<vmem>>, vector<8x1xf32>
    %189 = vector.broadcast %188 : vector<8x1xf32> to vector<8x256xf32>
    %190 = arith.mulf %189, %179 : vector<8x256xf32>
    %191 = arith.addf %172, %190 : vector<8x256xf32>
    %c0_57 = arith.constant 0 : index
    %c35 = arith.constant 35 : index
    %192 = vector.load %arg2[%c0_57, %c35] : memref<8x36xf32, #tpu.memory_space<vmem>>, vector<8x1xf32>
    %193 = vector.broadcast %192 : vector<8x1xf32> to vector<8x256xf32>
    %194 = arith.mulf %193, %179 : vector<8x256xf32>
    %195 = arith.addf %176, %194 : vector<8x256xf32>
    %c2_i32 = arith.constant 2 : i32
    %196 = tpu.dynamic_rotate %187 by %c2_i32 dim 0 : vector<8x256xf32>, i32 -> vector<8x256xf32>
    %197 = arith.addf %183, %196 : vector<8x256xf32>
    %c4_i32 = arith.constant 4 : i32
    %198 = tpu.dynamic_rotate %191 by %c4_i32 dim 0 : vector<8x256xf32>, i32 -> vector<8x256xf32>
    %199 = arith.addf %197, %198 : vector<8x256xf32>
    %c6_i32 = arith.constant 6 : i32
    %200 = tpu.dynamic_rotate %195 by %c6_i32 dim 0 : vector<8x256xf32>, i32 -> vector<8x256xf32>
    %201 = arith.addf %199, %200 : vector<8x256xf32>
    %c0_58 = arith.constant 0 : index
    %c0_59 = arith.constant 0 : index
    %202 = vector.load %arg3[%c0_58, %c0_59] : memref<8x1xf32, #tpu.memory_space<vmem>>, vector<8x1xf32>
    %203 = vector.broadcast %202 : vector<8x1xf32> to vector<8x256xf32>
    %204 = arith.addf %201, %203 : vector<8x256xf32>
    %cst_60 = arith.constant 0.000000e+00 : f32
    %205 = vector.broadcast %cst_60 : f32 to vector<8x256xf32>
    %206 = arith.maximumf %204, %205 : vector<8x256xf32>
    %c17_i32_61 = arith.constant 17 : i32
    %207 = tpu.dynamic_rotate %206 by %c17_i32_61 dim 1 : vector<8x256xf32>, i32 -> vector<8x256xf32>
    %cst_62 = arith.constant 0.000000e+00 : f32
    %208 = vector.broadcast %cst_62 : f32 to vector<8x256xf32>
    %209 = arith.select %7, %207, %208 : vector<8x256xi1>, vector<8x256xf32>
    %c0_63 = arith.constant 0 : index
    %c0_64 = arith.constant 0 : index
    %210 = vector.load %arg4[%c0_63, %c0_64] : memref<8x36xf32, #tpu.memory_space<vmem>>, vector<8x1xf32>
    %211 = vector.broadcast %210 : vector<8x1xf32> to vector<8x256xf32>
    %212 = arith.mulf %211, %209 : vector<8x256xf32>
    %c0_65 = arith.constant 0 : index
    %c1_66 = arith.constant 1 : index
    %213 = vector.load %arg4[%c0_65, %c1_66] : memref<8x36xf32, #tpu.memory_space<vmem>>, vector<8x1xf32>
    %214 = vector.broadcast %213 : vector<8x1xf32> to vector<8x256xf32>
    %215 = arith.mulf %214, %209 : vector<8x256xf32>
    %c0_67 = arith.constant 0 : index
    %c2_68 = arith.constant 2 : index
    %216 = vector.load %arg4[%c0_67, %c2_68] : memref<8x36xf32, #tpu.memory_space<vmem>>, vector<8x1xf32>
    %217 = vector.broadcast %216 : vector<8x1xf32> to vector<8x256xf32>
    %218 = arith.mulf %217, %209 : vector<8x256xf32>
    %c0_69 = arith.constant 0 : index
    %c3_70 = arith.constant 3 : index
    %219 = vector.load %arg4[%c0_69, %c3_70] : memref<8x36xf32, #tpu.memory_space<vmem>>, vector<8x1xf32>
    %220 = vector.broadcast %219 : vector<8x1xf32> to vector<8x256xf32>
    %221 = arith.mulf %220, %209 : vector<8x256xf32>
    %c16_i32_71 = arith.constant 16 : i32
    %222 = tpu.dynamic_rotate %206 by %c16_i32_71 dim 1 : vector<8x256xf32>, i32 -> vector<8x256xf32>
    %cst_72 = arith.constant 0.000000e+00 : f32
    %223 = vector.broadcast %cst_72 : f32 to vector<8x256xf32>
    %224 = arith.select %9, %222, %223 : vector<8x256xi1>, vector<8x256xf32>
    %c0_73 = arith.constant 0 : index
    %c4_74 = arith.constant 4 : index
    %225 = vector.load %arg4[%c0_73, %c4_74] : memref<8x36xf32, #tpu.memory_space<vmem>>, vector<8x1xf32>
    %226 = vector.broadcast %225 : vector<8x1xf32> to vector<8x256xf32>
    %227 = arith.mulf %226, %224 : vector<8x256xf32>
    %228 = arith.addf %212, %227 : vector<8x256xf32>
    %c0_75 = arith.constant 0 : index
    %c5_76 = arith.constant 5 : index
    %229 = vector.load %arg4[%c0_75, %c5_76] : memref<8x36xf32, #tpu.memory_space<vmem>>, vector<8x1xf32>
    %230 = vector.broadcast %229 : vector<8x1xf32> to vector<8x256xf32>
    %231 = arith.mulf %230, %224 : vector<8x256xf32>
    %232 = arith.addf %215, %231 : vector<8x256xf32>
    %c0_77 = arith.constant 0 : index
    %c6_78 = arith.constant 6 : index
    %233 = vector.load %arg4[%c0_77, %c6_78] : memref<8x36xf32, #tpu.memory_space<vmem>>, vector<8x1xf32>
    %234 = vector.broadcast %233 : vector<8x1xf32> to vector<8x256xf32>
    %235 = arith.mulf %234, %224 : vector<8x256xf32>
    %236 = arith.addf %218, %235 : vector<8x256xf32>
    %c0_79 = arith.constant 0 : index
    %c7_80 = arith.constant 7 : index
    %237 = vector.load %arg4[%c0_79, %c7_80] : memref<8x36xf32, #tpu.memory_space<vmem>>, vector<8x1xf32>
    %238 = vector.broadcast %237 : vector<8x1xf32> to vector<8x256xf32>
    %239 = arith.mulf %238, %224 : vector<8x256xf32>
    %240 = arith.addf %221, %239 : vector<8x256xf32>
    %c15_i32_81 = arith.constant 15 : i32
    %241 = tpu.dynamic_rotate %206 by %c15_i32_81 dim 1 : vector<8x256xf32>, i32 -> vector<8x256xf32>
    %cst_82 = arith.constant 0.000000e+00 : f32
    %242 = vector.broadcast %cst_82 : f32 to vector<8x256xf32>
    %243 = arith.select %14, %241, %242 : vector<8x256xi1>, vector<8x256xf32>
    %c0_83 = arith.constant 0 : index
    %c8_84 = arith.constant 8 : index
    %244 = vector.load %arg4[%c0_83, %c8_84] : memref<8x36xf32, #tpu.memory_space<vmem>>, vector<8x1xf32>
    %245 = vector.broadcast %244 : vector<8x1xf32> to vector<8x256xf32>
    %246 = arith.mulf %245, %243 : vector<8x256xf32>
    %247 = arith.addf %228, %246 : vector<8x256xf32>
    %c0_85 = arith.constant 0 : index
    %c9_86 = arith.constant 9 : index
    %248 = vector.load %arg4[%c0_85, %c9_86] : memref<8x36xf32, #tpu.memory_space<vmem>>, vector<8x1xf32>
    %249 = vector.broadcast %248 : vector<8x1xf32> to vector<8x256xf32>
    %250 = arith.mulf %249, %243 : vector<8x256xf32>
    %251 = arith.addf %232, %250 : vector<8x256xf32>
    %c0_87 = arith.constant 0 : index
    %c10_88 = arith.constant 10 : index
    %252 = vector.load %arg4[%c0_87, %c10_88] : memref<8x36xf32, #tpu.memory_space<vmem>>, vector<8x1xf32>
    %253 = vector.broadcast %252 : vector<8x1xf32> to vector<8x256xf32>
    %254 = arith.mulf %253, %243 : vector<8x256xf32>
    %255 = arith.addf %236, %254 : vector<8x256xf32>
    %c0_89 = arith.constant 0 : index
    %c11_90 = arith.constant 11 : index
    %256 = vector.load %arg4[%c0_89, %c11_90] : memref<8x36xf32, #tpu.memory_space<vmem>>, vector<8x1xf32>
    %257 = vector.broadcast %256 : vector<8x1xf32> to vector<8x256xf32>
    %258 = arith.mulf %257, %243 : vector<8x256xf32>
    %259 = arith.addf %240, %258 : vector<8x256xf32>
    %c1_i32_91 = arith.constant 1 : i32
    %260 = tpu.dynamic_rotate %206 by %c1_i32_91 dim 1 : vector<8x256xf32>, i32 -> vector<8x256xf32>
    %cst_92 = arith.constant 0.000000e+00 : f32
    %261 = vector.broadcast %cst_92 : f32 to vector<8x256xf32>
    %262 = arith.select %16, %260, %261 : vector<8x256xi1>, vector<8x256xf32>
    %c0_93 = arith.constant 0 : index
    %c12_94 = arith.constant 12 : index
    %263 = vector.load %arg4[%c0_93, %c12_94] : memref<8x36xf32, #tpu.memory_space<vmem>>, vector<8x1xf32>
    %264 = vector.broadcast %263 : vector<8x1xf32> to vector<8x256xf32>
    %265 = arith.mulf %264, %262 : vector<8x256xf32>
    %266 = arith.addf %247, %265 : vector<8x256xf32>
    %c0_95 = arith.constant 0 : index
    %c13_96 = arith.constant 13 : index
    %267 = vector.load %arg4[%c0_95, %c13_96] : memref<8x36xf32, #tpu.memory_space<vmem>>, vector<8x1xf32>
    %268 = vector.broadcast %267 : vector<8x1xf32> to vector<8x256xf32>
    %269 = arith.mulf %268, %262 : vector<8x256xf32>
    %270 = arith.addf %251, %269 : vector<8x256xf32>
    %c0_97 = arith.constant 0 : index
    %c14_98 = arith.constant 14 : index
    %271 = vector.load %arg4[%c0_97, %c14_98] : memref<8x36xf32, #tpu.memory_space<vmem>>, vector<8x1xf32>
    %272 = vector.broadcast %271 : vector<8x1xf32> to vector<8x256xf32>
    %273 = arith.mulf %272, %262 : vector<8x256xf32>
    %274 = arith.addf %255, %273 : vector<8x256xf32>
    %c0_99 = arith.constant 0 : index
    %c15_100 = arith.constant 15 : index
    %275 = vector.load %arg4[%c0_99, %c15_100] : memref<8x36xf32, #tpu.memory_space<vmem>>, vector<8x1xf32>
    %276 = vector.broadcast %275 : vector<8x1xf32> to vector<8x256xf32>
    %277 = arith.mulf %276, %262 : vector<8x256xf32>
    %278 = arith.addf %259, %277 : vector<8x256xf32>
    %c0_101 = arith.constant 0 : index
    %c16_102 = arith.constant 16 : index
    %279 = vector.load %arg4[%c0_101, %c16_102] : memref<8x36xf32, #tpu.memory_space<vmem>>, vector<8x1xf32>
    %280 = vector.broadcast %279 : vector<8x1xf32> to vector<8x256xf32>
    %281 = arith.mulf %280, %206 : vector<8x256xf32>
    %282 = arith.addf %266, %281 : vector<8x256xf32>
    %c0_103 = arith.constant 0 : index
    %c17_104 = arith.constant 17 : index
    %283 = vector.load %arg4[%c0_103, %c17_104] : memref<8x36xf32, #tpu.memory_space<vmem>>, vector<8x1xf32>
    %284 = vector.broadcast %283 : vector<8x1xf32> to vector<8x256xf32>
    %285 = arith.mulf %284, %206 : vector<8x256xf32>
    %286 = arith.addf %270, %285 : vector<8x256xf32>
    %c0_105 = arith.constant 0 : index
    %c18_106 = arith.constant 18 : index
    %287 = vector.load %arg4[%c0_105, %c18_106] : memref<8x36xf32, #tpu.memory_space<vmem>>, vector<8x1xf32>
    %288 = vector.broadcast %287 : vector<8x1xf32> to vector<8x256xf32>
    %289 = arith.mulf %288, %206 : vector<8x256xf32>
    %290 = arith.addf %274, %289 : vector<8x256xf32>
    %c0_107 = arith.constant 0 : index
    %c19_108 = arith.constant 19 : index
    %291 = vector.load %arg4[%c0_107, %c19_108] : memref<8x36xf32, #tpu.memory_space<vmem>>, vector<8x1xf32>
    %292 = vector.broadcast %291 : vector<8x1xf32> to vector<8x256xf32>
    %293 = arith.mulf %292, %206 : vector<8x256xf32>
    %294 = arith.addf %278, %293 : vector<8x256xf32>
    %c255_i32_109 = arith.constant 255 : i32
    %295 = tpu.dynamic_rotate %206 by %c255_i32_109 dim 1 : vector<8x256xf32>, i32 -> vector<8x256xf32>
    %cst_110 = arith.constant 0.000000e+00 : f32
    %296 = vector.broadcast %cst_110 : f32 to vector<8x256xf32>
    %297 = arith.select %18, %295, %296 : vector<8x256xi1>, vector<8x256xf32>
    %c0_111 = arith.constant 0 : index
    %c20_112 = arith.constant 20 : index
    %298 = vector.load %arg4[%c0_111, %c20_112] : memref<8x36xf32, #tpu.memory_space<vmem>>, vector<8x1xf32>
    %299 = vector.broadcast %298 : vector<8x1xf32> to vector<8x256xf32>
    %300 = arith.mulf %299, %297 : vector<8x256xf32>
    %301 = arith.addf %282, %300 : vector<8x256xf32>
    %c0_113 = arith.constant 0 : index
    %c21_114 = arith.constant 21 : index
    %302 = vector.load %arg4[%c0_113, %c21_114] : memref<8x36xf32, #tpu.memory_space<vmem>>, vector<8x1xf32>
    %303 = vector.broadcast %302 : vector<8x1xf32> to vector<8x256xf32>
    %304 = arith.mulf %303, %297 : vector<8x256xf32>
    %305 = arith.addf %286, %304 : vector<8x256xf32>
    %c0_115 = arith.constant 0 : index
    %c22_116 = arith.constant 22 : index
    %306 = vector.load %arg4[%c0_115, %c22_116] : memref<8x36xf32, #tpu.memory_space<vmem>>, vector<8x1xf32>
    %307 = vector.broadcast %306 : vector<8x1xf32> to vector<8x256xf32>
    %308 = arith.mulf %307, %297 : vector<8x256xf32>
    %309 = arith.addf %290, %308 : vector<8x256xf32>
    %c0_117 = arith.constant 0 : index
    %c23_118 = arith.constant 23 : index
    %310 = vector.load %arg4[%c0_117, %c23_118] : memref<8x36xf32, #tpu.memory_space<vmem>>, vector<8x1xf32>
    %311 = vector.broadcast %310 : vector<8x1xf32> to vector<8x256xf32>
    %312 = arith.mulf %311, %297 : vector<8x256xf32>
    %313 = arith.addf %294, %312 : vector<8x256xf32>
    %c241_i32_119 = arith.constant 241 : i32
    %314 = tpu.dynamic_rotate %206 by %c241_i32_119 dim 1 : vector<8x256xf32>, i32 -> vector<8x256xf32>
    %cst_120 = arith.constant 0.000000e+00 : f32
    %315 = vector.broadcast %cst_120 : f32 to vector<8x256xf32>
    %316 = arith.select %23, %314, %315 : vector<8x256xi1>, vector<8x256xf32>
    %c0_121 = arith.constant 0 : index
    %c24_122 = arith.constant 24 : index
    %317 = vector.load %arg4[%c0_121, %c24_122] : memref<8x36xf32, #tpu.memory_space<vmem>>, vector<8x1xf32>
    %318 = vector.broadcast %317 : vector<8x1xf32> to vector<8x256xf32>
    %319 = arith.mulf %318, %316 : vector<8x256xf32>
    %320 = arith.addf %301, %319 : vector<8x256xf32>
    %c0_123 = arith.constant 0 : index
    %c25_124 = arith.constant 25 : index
    %321 = vector.load %arg4[%c0_123, %c25_124] : memref<8x36xf32, #tpu.memory_space<vmem>>, vector<8x1xf32>
    %322 = vector.broadcast %321 : vector<8x1xf32> to vector<8x256xf32>
    %323 = arith.mulf %322, %316 : vector<8x256xf32>
    %324 = arith.addf %305, %323 : vector<8x256xf32>
    %c0_125 = arith.constant 0 : index
    %c26_126 = arith.constant 26 : index
    %325 = vector.load %arg4[%c0_125, %c26_126] : memref<8x36xf32, #tpu.memory_space<vmem>>, vector<8x1xf32>
    %326 = vector.broadcast %325 : vector<8x1xf32> to vector<8x256xf32>
    %327 = arith.mulf %326, %316 : vector<8x256xf32>
    %328 = arith.addf %309, %327 : vector<8x256xf32>
    %c0_127 = arith.constant 0 : index
    %c27_128 = arith.constant 27 : index
    %329 = vector.load %arg4[%c0_127, %c27_128] : memref<8x36xf32, #tpu.memory_space<vmem>>, vector<8x1xf32>
    %330 = vector.broadcast %329 : vector<8x1xf32> to vector<8x256xf32>
    %331 = arith.mulf %330, %316 : vector<8x256xf32>
    %332 = arith.addf %313, %331 : vector<8x256xf32>
    %c240_i32_129 = arith.constant 240 : i32
    %333 = tpu.dynamic_rotate %206 by %c240_i32_129 dim 1 : vector<8x256xf32>, i32 -> vector<8x256xf32>
    %cst_130 = arith.constant 0.000000e+00 : f32
    %334 = vector.broadcast %cst_130 : f32 to vector<8x256xf32>
    %335 = arith.select %25, %333, %334 : vector<8x256xi1>, vector<8x256xf32>
    %c0_131 = arith.constant 0 : index
    %c28_132 = arith.constant 28 : index
    %336 = vector.load %arg4[%c0_131, %c28_132] : memref<8x36xf32, #tpu.memory_space<vmem>>, vector<8x1xf32>
    %337 = vector.broadcast %336 : vector<8x1xf32> to vector<8x256xf32>
    %338 = arith.mulf %337, %335 : vector<8x256xf32>
    %339 = arith.addf %320, %338 : vector<8x256xf32>
    %c0_133 = arith.constant 0 : index
    %c29_134 = arith.constant 29 : index
    %340 = vector.load %arg4[%c0_133, %c29_134] : memref<8x36xf32, #tpu.memory_space<vmem>>, vector<8x1xf32>
    %341 = vector.broadcast %340 : vector<8x1xf32> to vector<8x256xf32>
    %342 = arith.mulf %341, %335 : vector<8x256xf32>
    %343 = arith.addf %324, %342 : vector<8x256xf32>
    %c0_135 = arith.constant 0 : index
    %c30_136 = arith.constant 30 : index
    %344 = vector.load %arg4[%c0_135, %c30_136] : memref<8x36xf32, #tpu.memory_space<vmem>>, vector<8x1xf32>
    %345 = vector.broadcast %344 : vector<8x1xf32> to vector<8x256xf32>
    %346 = arith.mulf %345, %335 : vector<8x256xf32>
    %347 = arith.addf %328, %346 : vector<8x256xf32>
    %c0_137 = arith.constant 0 : index
    %c31_138 = arith.constant 31 : index
    %348 = vector.load %arg4[%c0_137, %c31_138] : memref<8x36xf32, #tpu.memory_space<vmem>>, vector<8x1xf32>
    %349 = vector.broadcast %348 : vector<8x1xf32> to vector<8x256xf32>
    %350 = arith.mulf %349, %335 : vector<8x256xf32>
    %351 = arith.addf %332, %350 : vector<8x256xf32>
    %c239_i32_139 = arith.constant 239 : i32
    %352 = tpu.dynamic_rotate %206 by %c239_i32_139 dim 1 : vector<8x256xf32>, i32 -> vector<8x256xf32>
    %cst_140 = arith.constant 0.000000e+00 : f32
    %353 = vector.broadcast %cst_140 : f32 to vector<8x256xf32>
    %354 = arith.select %30, %352, %353 : vector<8x256xi1>, vector<8x256xf32>
    %c0_141 = arith.constant 0 : index
    %c32_142 = arith.constant 32 : index
    %355 = vector.load %arg4[%c0_141, %c32_142] : memref<8x36xf32, #tpu.memory_space<vmem>>, vector<8x1xf32>
    %356 = vector.broadcast %355 : vector<8x1xf32> to vector<8x256xf32>
    %357 = arith.mulf %356, %354 : vector<8x256xf32>
    %358 = arith.addf %339, %357 : vector<8x256xf32>
    %c0_143 = arith.constant 0 : index
    %c33_144 = arith.constant 33 : index
    %359 = vector.load %arg4[%c0_143, %c33_144] : memref<8x36xf32, #tpu.memory_space<vmem>>, vector<8x1xf32>
    %360 = vector.broadcast %359 : vector<8x1xf32> to vector<8x256xf32>
    %361 = arith.mulf %360, %354 : vector<8x256xf32>
    %362 = arith.addf %343, %361 : vector<8x256xf32>
    %c0_145 = arith.constant 0 : index
    %c34_146 = arith.constant 34 : index
    %363 = vector.load %arg4[%c0_145, %c34_146] : memref<8x36xf32, #tpu.memory_space<vmem>>, vector<8x1xf32>
    %364 = vector.broadcast %363 : vector<8x1xf32> to vector<8x256xf32>
    %365 = arith.mulf %364, %354 : vector<8x256xf32>
    %366 = arith.addf %347, %365 : vector<8x256xf32>
    %c0_147 = arith.constant 0 : index
    %c35_148 = arith.constant 35 : index
    %367 = vector.load %arg4[%c0_147, %c35_148] : memref<8x36xf32, #tpu.memory_space<vmem>>, vector<8x1xf32>
    %368 = vector.broadcast %367 : vector<8x1xf32> to vector<8x256xf32>
    %369 = arith.mulf %368, %354 : vector<8x256xf32>
    %370 = arith.addf %351, %369 : vector<8x256xf32>
    %c2_i32_149 = arith.constant 2 : i32
    %371 = tpu.dynamic_rotate %362 by %c2_i32_149 dim 0 : vector<8x256xf32>, i32 -> vector<8x256xf32>
    %372 = arith.addf %358, %371 : vector<8x256xf32>
    %c4_i32_150 = arith.constant 4 : i32
    %373 = tpu.dynamic_rotate %366 by %c4_i32_150 dim 0 : vector<8x256xf32>, i32 -> vector<8x256xf32>
    %374 = arith.addf %372, %373 : vector<8x256xf32>
    %c6_i32_151 = arith.constant 6 : i32
    %375 = tpu.dynamic_rotate %370 by %c6_i32_151 dim 0 : vector<8x256xf32>, i32 -> vector<8x256xf32>
    %376 = arith.addf %374, %375 : vector<8x256xf32>
    %c0_152 = arith.constant 0 : index
    %c0_153 = arith.constant 0 : index
    %377 = vector.load %arg5[%c0_152, %c0_153] : memref<8x1xf32, #tpu.memory_space<vmem>>, vector<8x1xf32>
    %378 = vector.broadcast %377 : vector<8x1xf32> to vector<8x256xf32>
    %379 = arith.addf %376, %378 : vector<8x256xf32>
    %380 = arith.addf %31, %379 : vector<8x256xf32>
    %cst_154 = arith.constant 0.000000e+00 : f32
    %381 = vector.broadcast %cst_154 : f32 to vector<8x256xf32>
    %382 = arith.maximumf %380, %381 : vector<8x256xf32>
    %c0_155 = arith.constant 0 : index
    %c0_156 = arith.constant 0 : index
    %383 = vector.load %arg6[%c0_155, %c0_156] : memref<8x256xf32, #tpu.memory_space<vmem>>, vector<8x256xf32>
    tpu.vector_store %arg6[%c0_155, %c0_156], %382 {strides = array<i32>} : memref<8x256xf32, #tpu.memory_space<vmem>>, vector<8x256xf32>,
    return
  }
  func.func @transform_0(%arg0: i32) -> (i32, i32) {
    %c0_i32 = arith.constant 0 : i32
    %c0_i32_0 = arith.constant 0 : i32
    %c0_i32_1 = arith.constant 0 : i32
    return %c0_i32, %c0_i32_0 : i32, i32
  }
  func.func @transform_1(%arg0: i32) -> (i32, i32) {
    %c0_i32 = arith.constant 0 : i32
    %c0_i32_0 = arith.constant 0 : i32
    %c0_i32_1 = arith.constant 0 : i32
    return %c0_i32, %c0_i32_0 : i32, i32
  }
  func.func @transform_2(%arg0: i32) -> (i32, i32) {
    %c0_i32 = arith.constant 0 : i32
    %c0_i32_0 = arith.constant 0 : i32
    %c0_i32_1 = arith.constant 0 : i32
    return %c0_i32, %c0_i32_0 : i32, i32
  }
  func.func @transform_3(%arg0: i32) -> (i32, i32) {
    %c0_i32 = arith.constant 0 : i32
    %c0_i32_0 = arith.constant 0 : i32
    %c0_i32_1 = arith.constant 0 : i32
    return %c0_i32, %c0_i32_0 : i32, i32
  }
  func.func @transform_4(%arg0: i32) -> (i32, i32) {
    %c0_i32 = arith.constant 0 : i32
    %c0_i32_0 = arith.constant 0 : i32
    %c0_i32_1 = arith.constant 0 : i32
    return %c0_i32, %c0_i32_0 : i32, i32
  }
  func.func @transform_5(%arg0: i32) -> (i32, i32) {
    %c0_i32 = arith.constant 0 : i32
    %c0_i32_0 = arith.constant 0 : i32
    %c0_i32_1 = arith.constant 0 : i32
    return %c0_i32, %c0_i32_0 : i32, i32
  }
}

</mosaic_0001>

<llo_original>
// kernel: tpu_custom_call.1
$region0: #{tpu_custom_call.1}
  #allocation0 [shape = 'u32[]', space=smem, size = 0x4, offset = 0x4, fixed_abs, tag = 'smem constant byte address 0x4 - core index']
  #allocation1 [shape = 'u32[72,128]{1,0:T(1,128)}', space=vmem, size = 0x9000, scoped, tag = 'internal scratch']
  %s0 = inlined_call_operand.vmem [shape: f32[8,256], index: 0, kind: input, shape index: {}]
  %s1 = inlined_call_operand.hbm [shape: f32[8,36], index: 1, kind: input, shape index: {}]
  %s2 = inlined_call_operand.vmem [shape: f32[8,1], index: 2, kind: input, shape index: {}]
  %s3 = inlined_call_operand.hbm [shape: f32[8,36], index: 3, kind: input, shape index: {}]
  %s4 = inlined_call_operand.vmem [shape: f32[8,1], index: 4, kind: input, shape index: {}]
  %s5 = inlined_call_operand.hbm [shape: f32[8,256], index: 5, kind: output, shape index: {}]
  %s6 = sld [smem:[#allocation0]]
  $region38: #{tpu_custom_call.1} parent=0
    _
  %s8 = ssub.s32 1, %s6
  %s9 = scalar_select 0, %s8, %s6
  $region1: #{tpu_custom_call.1} parent=0
    #allocation2 [shape = 'u8[4096]{0}', space=vmem, size = 0x1000, scoped, tag = 'input window, operand 1, single buffered']
    #allocation3 [shape = 's32[1]{0}', space=sflag, size = 0x4, scoped, tag = 'scoped memory for tpu_custom_call.1']
    #allocation4 [shape = 's32[1]{0}', space=sflag, size = 0x4, scoped, tag = 'scoped memory for tpu_custom_call.1']
    #allocation5 [shape = 'u8[4096]{0}', space=vmem, size = 0x1000, scoped, tag = 'input window, operand 3, single buffered']
    #allocation6 [shape = 's32[1]{0}', space=sflag, size = 0x4, scoped, tag = 'scoped memory for tpu_custom_call.1']
    #allocation7 [shape = 'u8[8192]{0}', space=vmem, size = 0x2000, scoped, tag = 'output window, operand 0, single buffered']
    %10 = vsyncpa [#allocation3], 0
    %11 = vsyncpa [#allocation6], 0
    %12 = vsyncpa [#allocation4], 0
    // Predicated region
    $region2: #{tpu_custom_call.1} parent=1 // pred_check
      _
    $region3: #{tpu_custom_call.1} parent=1 // pred_check_branch
      %14 = sbr.rel (0) target = $region5
    $region4: #{tpu_custom_call.1} parent=1 // pred_region
      _
    $region5: #{tpu_custom_call.1} parent=1 // pred_fallthru
      _
    // Predicated region
    $region6: #{tpu_custom_call.1} parent=1 // pred_check
      _
    $region7: #{tpu_custom_call.1} parent=1 // pred_check_branch
      %16 = sbr.rel (0) target = $region9
    $region8: #{tpu_custom_call.1} parent=1 // pred_region
      %18 = vsyncadd [#allocation3], 0
      %s20 = sshll.u32 %s1, 4
      %s21 = int_to_ptr.hbm [resolvable:$true] %s20
      %s22 = sshll.u32 [#allocation2], 4
      %s23 = int_to_ptr.vmem [resolvable:$true] %s22
      %25 = dma.hbm_to_vmem [thread:$0]  %s21, 128, %s23, [#allocation3]
    $region9: #{tpu_custom_call.1} parent=1 // pred_fallthru
      _
    // Predicated region
    $region10: #{tpu_custom_call.1} parent=1 // pred_check
      _
    $region11: #{tpu_custom_call.1} parent=1 // pred_check_branch
      %27 = sbr.rel (0) target = $region13
    $region12: #{tpu_custom_call.1} parent=1 // pred_region
      _
    $region13: #{tpu_custom_call.1} parent=1 // pred_fallthru
      _
    // Predicated region
    $region14: #{tpu_custom_call.1} parent=1 // pred_check
      _
    $region15: #{tpu_custom_call.1} parent=1 // pred_check_branch
      %29 = sbr.rel (0) target = $region17
    $region16: #{tpu_custom_call.1} parent=1 // pred_region
      %31 = vsyncadd [#allocation6], 0
      %s33 = sshll.u32 %s3, 4
      %s34 = int_to_ptr.hbm [resolvable:$true] %s33
      %s35 = sshll.u32 [#allocation5], 4
      %s36 = int_to_ptr.vmem [resolvable:$true] %s35
      %38 = dma.hbm_to_vmem [thread:$0]  %s34, 128, %s36, [#allocation6]
    $region17: #{tpu_custom_call.1} parent=1 // pred_fallthru
      _
    // Predicated region
    $region18: #{tpu_custom_call.1} parent=1 // pred_check
      _
    $region19: #{tpu_custom_call.1} parent=1 // pred_check_branch
      %40 = sbr.rel (0) target = $region21
    $region20: #{tpu_custom_call.1} parent=1 // pred_region
      _
    $region21: #{tpu_custom_call.1} parent=1 // pred_fallthru
      _
    // Predicated region
    $region22: #{tpu_custom_call.1} parent=1 // pred_check
      _
    $region23: #{tpu_custom_call.1} parent=1 // pred_check_branch
      %42 = sbr.rel (0) target = $region25
    $region24: #{tpu_custom_call.1} parent=1 // pred_region
      %44 = dma.done [#allocation3], 128
    $region25: #{tpu_custom_call.1} parent=1 // pred_fallthru
      _
    // Predicated region
    $region26: #{tpu_custom_call.1} parent=1 // pred_check
      _
    $region27: #{tpu_custom_call.1} parent=1 // pred_check_branch
      %46 = sbr.rel (0) target = $region29
    $region28: #{tpu_custom_call.1} parent=1 // pred_region
      %48 = dma.done [#allocation6], 128
    $region29: #{tpu_custom_call.1} parent=1 // pred_fallthru
      _
    %v49 = vlaneseq
    %v50 = vand.u32 %v49, 127
    %v51 = vadd.s32 %v50, 128
    %v52 = vand.u32 %v50, 15
    %v53 = vand.u32 %v51, 15
    %vm54 = vcmp.ge.s32.totalorder %v50, 16
    %vm55 = vcmp.ge.s32.totalorder %v51, 16
    %vm56 = vcmp.ge.s32.totalorder %v52, 1
    %vm57 = vcmp.ge.s32.totalorder %v53, 1
    %vm58 = vmand %vm54, %vm56
    %vm59 = vmand %vm55, %vm57
    %vm60 = vcmp.lt.s32.totalorder %v52, 15
    %vm61 = vcmp.lt.s32.totalorder %v53, 15
    %vm62 = vmand %vm54, %vm60
    %vm63 = vmand %vm55, %vm61
    %vm64 = vcmp.lt.s32.totalorder %v50, 240
    %vm65 = vcmp.lt.s32.totalorder %v51, 240
    %vm66 = vmand %vm64, %vm56
    %vm67 = vmand %vm65, %vm57
    %vm68 = vmand %vm64, %vm60
    %vm69 = vmand %vm65, %vm61
    %v70 = vld [vmem:[%s0] sm:$0xff]
    %v71 = vld [vmem:[%s0 + $0x8] sm:$0xff]
    %72 = vrot.lane.b32.xlu0 %v70, 17
    %v73 = vpop.permute.xlu0 %72
    %74 = vrot.lane.b32.xlu0 %v71, 17
    %v75 = vpop.permute.xlu0 %74
    %vm76 = vcmp.lt.s32.totalorder %v50, 17
    %v77 = vsel %vm76, %v73, %v75
    %v78 = vsel %vm76, %v75, %v73
    %v79 = vsel %vm58, %v78, 0.0
    %v80 = vsel %vm59, %v77, 0.0
    %v81 = vld [vmem:[#allocation2] sm:$0xff]
    %83 = vset.pattern.permute.xlu0 0
    %84 = vperm.xlu0 %83, %v81
    %v85 = vpop.permute.xlu0 %84
    %v87 = vmul.f32 %v85, %v79
    %v88 = vmul.f32 %v85, %v80
    %89 = vset.pattern.permute.xlu0 1
    %90 = vperm.xlu0 %89, %v81
    %v91 = vpop.permute.xlu0 %90
    %v93 = vmul.f32 %v91, %v79
    %v94 = vmul.f32 %v91, %v80
    %95 = vset.pattern.permute.xlu0 2
    %96 = vperm.xlu0 %95, %v81
    %v97 = vpop.permute.xlu0 %96
    %v99 = vmul.f32 %v97, %v79
    %v100 = vmul.f32 %v97, %v80
    %101 = vset.pattern.permute.xlu0 3
    %102 = vperm.xlu0 %101, %v81
    %v103 = vpop.permute.xlu0 %102
    %v105 = vmul.f32 %v103, %v79
    %v106 = vmul.f32 %v103, %v80
    %107 = vrot.lane.b32.xlu0 %v70, 16
    %v108 = vpop.permute.xlu0 %107
    %109 = vrot.lane.b32.xlu0 %v71, 16
    %v110 = vpop.permute.xlu0 %109
    %vm111 = vcmp.lt.s32.totalorder %v50, 16
    %v112 = vsel %vm111, %v108, %v110
    %v113 = vsel %vm111, %v110, %v108
    %v114 = vsel %vm54, %v113, 0.0
    %v115 = vsel %vm55, %v112, 0.0
    %116 = vset.pattern.permute.xlu0 4
    %117 = vperm.xlu0 %116, %v81
    %v118 = vpop.permute.xlu0 %117
    %v120 = vmul.f32 %v118, %v114
    %v121 = vmul.f32 %v118, %v115
    %v122 = vadd.f32 %v87, %v120
    %v123 = vadd.f32 %v88, %v121
    %124 = vset.pattern.permute.xlu0 5
    %125 = vperm.xlu0 %124, %v81
    %v126 = vpop.permute.xlu0 %125
    %v128 = vmul.f32 %v126, %v114
    %v129 = vmul.f32 %v126, %v115
    %v130 = vadd.f32 %v93, %v128
    %v131 = vadd.f32 %v94, %v129
    %132 = vset.pattern.permute.xlu0 6
    %133 = vperm.xlu0 %132, %v81
    %v134 = vpop.permute.xlu0 %133
    %v136 = vmul.f32 %v134, %v114
    %v137 = vmul.f32 %v134, %v115
    %v138 = vadd.f32 %v99, %v136
    %v139 = vadd.f32 %v100, %v137
    %140 = vset.pattern.permute.xlu0 7
    %141 = vperm.xlu0 %140, %v81
    %v142 = vpop.permute.xlu0 %141
    %v144 = vmul.f32 %v142, %v114
    %v145 = vmul.f32 %v142, %v115
    %v146 = vadd.f32 %v105, %v144
    %v147 = vadd.f32 %v106, %v145
    %148 = vrot.lane.b32.xlu0 %v70, 15
    %v149 = vpop.permute.xlu0 %148
    %150 = vrot.lane.b32.xlu0 %v71, 15
    %v151 = vpop.permute.xlu0 %150
    %vm152 = vcmp.lt.s32.totalorder %v50, 15
    %v153 = vsel %vm152, %v149, %v151
    %v154 = vsel %vm152, %v151, %v149
    %v155 = vsel %vm62, %v154, 0.0
    %v156 = vsel %vm63, %v153, 0.0
    %157 = vset.pattern.permute.xlu0 8
    %158 = vperm.xlu0 %157, %v81
    %v159 = vpop.permute.xlu0 %158
    %v161 = vmul.f32 %v159, %v155
    %v162 = vmul.f32 %v159, %v156
    %v163 = vadd.f32 %v122, %v161
    %v164 = vadd.f32 %v123, %v162
    %165 = vset.pattern.permute.xlu0 9
    %166 = vperm.xlu0 %165, %v81
    %v167 = vpop.permute.xlu0 %166
    %v169 = vmul.f32 %v167, %v155
    %v170 = vmul.f32 %v167, %v156
    %v171 = vadd.f32 %v130, %v169
    %v172 = vadd.f32 %v131, %v170
    %173 = vset.pattern.permute.xlu0 10
    %174 = vperm.xlu0 %173, %v81
    %v175 = vpop.permute.xlu0 %174
    %v177 = vmul.f32 %v175, %v155
    %v178 = vmul.f32 %v175, %v156
    %v179 = vadd.f32 %v138, %v177
    %v180 = vadd.f32 %v139, %v178
    %181 = vset.pattern.permute.xlu0 11
    %182 = vperm.xlu0 %181, %v81
    %v183 = vpop.permute.xlu0 %182
    %v185 = vmul.f32 %v183, %v155
    %v186 = vmul.f32 %v183, %v156
    %v187 = vadd.f32 %v146, %v185
    %v188 = vadd.f32 %v147, %v186
    %189 = vrot.lane.b32.xlu0 %v70, 1
    %v190 = vpop.permute.xlu0 %189
    %191 = vrot.lane.b32.xlu0 %v71, 1
    %v192 = vpop.permute.xlu0 %191
    %vm193 = vcmp.lt.s32.totalorder %v50, 1
    %v194 = vsel %vm193, %v190, %v192
    %v195 = vsel %vm193, %v192, %v190
    %v196 = vsel %vm56, %v195, 0.0
    %v197 = vsel %vm57, %v194, 0.0
    %198 = vset.pattern.permute.xlu0 12
    %199 = vperm.xlu0 %198, %v81
    %v200 = vpop.permute.xlu0 %199
    %v202 = vmul.f32 %v200, %v196
    %v203 = vmul.f32 %v200, %v197
    %v204 = vadd.f32 %v163, %v202
    %v205 = vadd.f32 %v164, %v203
    %206 = vset.pattern.permute.xlu0 13
    %207 = vperm.xlu0 %206, %v81
    %v208 = vpop.permute.xlu0 %207
    %v210 = vmul.f32 %v208, %v196
    %v211 = vmul.f32 %v208, %v197
    %v212 = vadd.f32 %v171, %v210
    %v213 = vadd.f32 %v172, %v211
    %214 = vset.pattern.permute.xlu0 14
    %215 = vperm.xlu0 %214, %v81
    %v216 = vpop.permute.xlu0 %215
    %v218 = vmul.f32 %v216, %v196
    %v219 = vmul.f32 %v216, %v197
    %v220 = vadd.f32 %v179, %v218
    %v221 = vadd.f32 %v180, %v219
    %222 = vset.pattern.permute.xlu0 15
    %223 = vperm.xlu0 %222, %v81
    %v224 = vpop.permute.xlu0 %223
    %v226 = vmul.f32 %v224, %v196
    %v227 = vmul.f32 %v224, %v197
    %v228 = vadd.f32 %v187, %v226
    %v229 = vadd.f32 %v188, %v227
    %230 = vset.pattern.permute.xlu0 16
    %231 = vperm.xlu0 %230, %v81
    %v232 = vpop.permute.xlu0 %231
    %v234 = vmul.f32 %v232, %v70
    %v235 = vmul.f32 %v232, %v71
    %v236 = vadd.f32 %v204, %v234
    %v237 = vadd.f32 %v205, %v235
    %238 = vset.pattern.permute.xlu0 17
    %239 = vperm.xlu0 %238, %v81
    %v240 = vpop.permute.xlu0 %239
    %v242 = vmul.f32 %v240, %v70
    %v243 = vmul.f32 %v240, %v71
    %v244 = vadd.f32 %v212, %v242
    %v245 = vadd.f32 %v213, %v243
    %246 = vset.pattern.permute.xlu0 18
    %247 = vperm.xlu0 %246, %v81
    %v248 = vpop.permute.xlu0 %247
    %v250 = vmul.f32 %v248, %v70
    %v251 = vmul.f32 %v248, %v71
    %v252 = vadd.f32 %v220, %v250
    %v253 = vadd.f32 %v221, %v251
    %254 = vset.pattern.permute.xlu0 19
    %255 = vperm.xlu0 %254, %v81
    %v256 = vpop.permute.xlu0 %255
    %v258 = vmul.f32 %v256, %v70
    %v259 = vmul.f32 %v256, %v71
    %v260 = vadd.f32 %v228, %v258
    %v261 = vadd.f32 %v229, %v259
    %262 = vrot.lane.b32.xlu0 %v70, 127
    %v263 = vpop.permute.xlu0 %262
    %264 = vrot.lane.b32.xlu0 %v71, 127
    %v265 = vpop.permute.xlu0 %264
    %vm266 = vcmp.lt.s32.totalorder %v50, 127
    %v267 = vsel %vm266, %v263, %v265
    %v268 = vsel %vm266, %v265, %v263
    %v269 = vsel %vm60, %v267, 0.0
    %v270 = vsel %vm61, %v268, 0.0
    %271 = vset.pattern.permute.xlu0 20
    %272 = vperm.xlu0 %271, %v81
    %v273 = vpop.permute.xlu0 %272
    %v275 = vmul.f32 %v273, %v269
    %v276 = vmul.f32 %v273, %v270
    %v277 = vadd.f32 %v236, %v275
    %v278 = vadd.f32 %v237, %v276
    %279 = vset.pattern.permute.xlu0 21
    %280 = vperm.xlu0 %279, %v81
    %v281 = vpop.permute.xlu0 %280
    %v283 = vmul.f32 %v281, %v269
    %v284 = vmul.f32 %v281, %v270
    %v285 = vadd.f32 %v244, %v283
    %v286 = vadd.f32 %v245, %v284
    %287 = vset.pattern.permute.xlu0 22
    %288 = vperm.xlu0 %287, %v81
    %v289 = vpop.permute.xlu0 %288
    %v291 = vmul.f32 %v289, %v269
    %v292 = vmul.f32 %v289, %v270
    %v293 = vadd.f32 %v252, %v291
    %v294 = vadd.f32 %v253, %v292
    %295 = vset.pattern.permute.xlu0 23
    %296 = vperm.xlu0 %295, %v81
    %v297 = vpop.permute.xlu0 %296
    %v299 = vmul.f32 %v297, %v269
    %v300 = vmul.f32 %v297, %v270
    %v301 = vadd.f32 %v260, %v299
    %v302 = vadd.f32 %v261, %v300
    %303 = vrot.lane.b32.xlu0 %v70, 113
    %v304 = vpop.permute.xlu0 %303
    %305 = vrot.lane.b32.xlu0 %v71, 113
    %v306 = vpop.permute.xlu0 %305
    %vm307 = vcmp.lt.s32.totalorder %v50, 113
    %v308 = vsel %vm307, %v304, %v306
    %v309 = vsel %vm307, %v306, %v304
    %v310 = vsel %vm66, %v308, 0.0
    %v311 = vsel %vm67, %v309, 0.0
    %312 = vset.pattern.permute.xlu0 24
    %313 = vperm.xlu0 %312, %v81
    %v314 = vpop.permute.xlu0 %313
    %v316 = vmul.f32 %v314, %v310
    %v317 = vmul.f32 %v314, %v311
    %v318 = vadd.f32 %v277, %v316
    %v319 = vadd.f32 %v278, %v317
    %320 = vset.pattern.permute.xlu0 25
    %321 = vperm.xlu0 %320, %v81
    %v322 = vpop.permute.xlu0 %321
    %v324 = vmul.f32 %v322, %v310
    %v325 = vmul.f32 %v322, %v311
    %v326 = vadd.f32 %v285, %v324
    %v327 = vadd.f32 %v286, %v325
    %328 = vset.pattern.permute.xlu0 26
    %329 = vperm.xlu0 %328, %v81
    %v330 = vpop.permute.xlu0 %329
    %v332 = vmul.f32 %v330, %v310
    %v333 = vmul.f32 %v330, %v311
    %v334 = vadd.f32 %v293, %v332
    %v335 = vadd.f32 %v294, %v333
    %336 = vset.pattern.permute.xlu0 27
    %337 = vperm.xlu0 %336, %v81
    %v338 = vpop.permute.xlu0 %337
    %v340 = vmul.f32 %v338, %v310
    %v341 = vmul.f32 %v338, %v311
    %v342 = vadd.f32 %v301, %v340
    %v343 = vadd.f32 %v302, %v341
    %344 = vrot.lane.b32.xlu0 %v70, 112
    %v345 = vpop.permute.xlu0 %344
    %346 = vrot.lane.b32.xlu0 %v71, 112
    %v347 = vpop.permute.xlu0 %346
    %vm348 = vcmp.lt.s32.totalorder %v50, 112
    %v349 = vsel %vm348, %v345, %v347
    %v350 = vsel %vm348, %v347, %v345
    %v351 = vsel %vm64, %v349, 0.0
    %v352 = vsel %vm65, %v350, 0.0
    %353 = vset.pattern.permute.xlu0 28
    %354 = vperm.xlu0 %353, %v81
    %v355 = vpop.permute.xlu0 %354
    %v357 = vmul.f32 %v355, %v351
    %v358 = vmul.f32 %v355, %v352
    %v359 = vadd.f32 %v318, %v357
    %v360 = vadd.f32 %v319, %v358
    %361 = vset.pattern.permute.xlu0 29
    %362 = vperm.xlu0 %361, %v81
    %v363 = vpop.permute.xlu0 %362
    %v365 = vmul.f32 %v363, %v351
    %v366 = vmul.f32 %v363, %v352
    %v367 = vadd.f32 %v326, %v365
    %v368 = vadd.f32 %v327, %v366
    %369 = vset.pattern.permute.xlu0 30
    %370 = vperm.xlu0 %369, %v81
    %v371 = vpop.permute.xlu0 %370
    %v373 = vmul.f32 %v371, %v351
    %v374 = vmul.f32 %v371, %v352
    %v375 = vadd.f32 %v334, %v373
    %v376 = vadd.f32 %v335, %v374
    %377 = vset.pattern.permute.xlu0 31
    %378 = vperm.xlu0 %377, %v81
    %v379 = vpop.permute.xlu0 %378
    %v381 = vmul.f32 %v379, %v351
    %v382 = vmul.f32 %v379, %v352
    %v383 = vadd.f32 %v342, %v381
    %v384 = vadd.f32 %v343, %v382
    %385 = vrot.lane.b32.xlu0 %v70, 111
    %v386 = vpop.permute.xlu0 %385
    %387 = vrot.lane.b32.xlu0 %v71, 111
    %v388 = vpop.permute.xlu0 %387
    %vm389 = vcmp.lt.s32.totalorder %v50, 111
    %v390 = vsel %vm389, %v386, %v388
    %v391 = vsel %vm389, %v388, %v386
    %v392 = vsel %vm68, %v390, 0.0
    %v393 = vsel %vm69, %v391, 0.0
    %394 = vset.pattern.permute.xlu0 32
    %395 = vperm.xlu0 %394, %v81
    %v396 = vpop.permute.xlu0 %395
    %v398 = vmul.f32 %v396, %v392
    %v399 = vmul.f32 %v396, %v393
    %v400 = vadd.f32 %v359, %v398
    %v401 = vadd.f32 %v360, %v399
    %402 = vset.pattern.permute.xlu0 33
    %403 = vperm.xlu0 %402, %v81
    %v404 = vpop.permute.xlu0 %403
    %v406 = vmul.f32 %v404, %v392
    %v407 = vmul.f32 %v404, %v393
    %v408 = vadd.f32 %v367, %v406
    %v409 = vadd.f32 %v368, %v407
    %410 = vset.pattern.permute.xlu0 34
    %411 = vperm.xlu0 %410, %v81
    %v412 = vpop.permute.xlu0 %411
    %v414 = vmul.f32 %v412, %v392
    %v415 = vmul.f32 %v412, %v393
    %v416 = vadd.f32 %v375, %v414
    %v417 = vadd.f32 %v376, %v415
    %418 = vset.pattern.permute.xlu0 35
    %419 = vperm.xlu0 %418, %v81
    %v420 = vpop.permute.xlu0 %419
    %v422 = vmul.f32 %v420, %v392
    %v423 = vmul.f32 %v420, %v393
    %v424 = vadd.f32 %v383, %v422
    %v425 = vadd.f32 %v384, %v423
    %v426 = vrot.slane %v408, 6
    %v427 = vrot.slane %v409, 6
    %v428 = vadd.f32 %v400, %v426
    %v429 = vadd.f32 %v401, %v427
    %v430 = vrot.slane %v416, 4
    %v431 = vrot.slane %v417, 4
    %v432 = vadd.f32 %v428, %v430
    %v433 = vadd.f32 %v429, %v431
    %v434 = vrot.slane %v424, 2
    %v435 = vrot.slane %v425, 2
    %v436 = vadd.f32 %v432, %v434
    %v437 = vadd.f32 %v433, %v435
    %v438 = vld [vmem:[%s2] sm:$0xff]
    %440 = vset.pattern.permute.xlu0 0
    %441 = vperm.xlu0 %440, %v438
    %v442 = vpop.permute.xlu0 %441
    %v444 = vadd.f32 %v436, %v442
    %v445 = vadd.f32 %v437, %v442
    %v446 = vmax.f32 %v444, 0.0
    %v447 = vmax.f32 %v445, 0.0
    %448 = vrot.lane.b32.xlu0 %v446, 17
    %v449 = vpop.permute.xlu0 %448
    %450 = vrot.lane.b32.xlu0 %v447, 17
    %v451 = vpop.permute.xlu0 %450
    %v452 = vsel %vm76, %v449, %v451
    %v453 = vsel %vm76, %v451, %v449
    %v454 = vsel %vm58, %v453, 0.0
    %v455 = vsel %vm59, %v452, 0.0
    %v456 = vld [vmem:[#allocation5] sm:$0xff]
    %458 = vset.pattern.permute.xlu0 0
    %459 = vperm.xlu0 %458, %v456
    %v460 = vpop.permute.xlu0 %459
    %v462 = vmul.f32 %v460, %v454
    %v463 = vmul.f32 %v460, %v455
    %464 = vset.pattern.permute.xlu0 1
    %465 = vperm.xlu0 %464, %v456
    %v466 = vpop.permute.xlu0 %465
    %v468 = vmul.f32 %v466, %v454
    %v469 = vmul.f32 %v466, %v455
    %470 = vset.pattern.permute.xlu0 2
    %471 = vperm.xlu0 %470, %v456
    %v472 = vpop.permute.xlu0 %471
    %v474 = vmul.f32 %v472, %v454
    %v475 = vmul.f32 %v472, %v455
    %476 = vset.pattern.permute.xlu0 3
    %477 = vperm.xlu0 %476, %v456
    %v478 = vpop.permute.xlu0 %477
    %v480 = vmul.f32 %v478, %v454
    %v481 = vmul.f32 %v478, %v455
    %482 = vrot.lane.b32.xlu0 %v446, 16
    %v483 = vpop.permute.xlu0 %482
    %484 = vrot.lane.b32.xlu0 %v447, 16
    %v485 = vpop.permute.xlu0 %484
    %v486 = vsel %vm111, %v483, %v485
    %v487 = vsel %vm111, %v485, %v483
    %v488 = vsel %vm54, %v487, 0.0
    %v489 = vsel %vm55, %v486, 0.0
    %490 = vset.pattern.permute.xlu0 4
    %491 = vperm.xlu0 %490, %v456
    %v492 = vpop.permute.xlu0 %491
    %v494 = vmul.f32 %v492, %v488
    %v495 = vmul.f32 %v492, %v489
    %v496 = vadd.f32 %v462, %v494
    %v497 = vadd.f32 %v463, %v495
    %498 = vset.pattern.permute.xlu0 5
    %499 = vperm.xlu0 %498, %v456
    %v500 = vpop.permute.xlu0 %499
    %v502 = vmul.f32 %v500, %v488
    %v503 = vmul.f32 %v500, %v489
    %v504 = vadd.f32 %v468, %v502
    %v505 = vadd.f32 %v469, %v503
    %506 = vset.pattern.permute.xlu0 6
    %507 = vperm.xlu0 %506, %v456
    %v508 = vpop.permute.xlu0 %507
    %v510 = vmul.f32 %v508, %v488
    %v511 = vmul.f32 %v508, %v489
    %v512 = vadd.f32 %v474, %v510
    %v513 = vadd.f32 %v475, %v511
    %514 = vset.pattern.permute.xlu0 7
    %515 = vperm.xlu0 %514, %v456
    %v516 = vpop.permute.xlu0 %515
    %v518 = vmul.f32 %v516, %v488
    %v519 = vmul.f32 %v516, %v489
    %v520 = vadd.f32 %v480, %v518
    %v521 = vadd.f32 %v481, %v519
    %522 = vrot.lane.b32.xlu0 %v446, 15
    %v523 = vpop.permute.xlu0 %522
    %524 = vrot.lane.b32.xlu0 %v447, 15
    %v525 = vpop.permute.xlu0 %524
    %v526 = vsel %vm152, %v523, %v525
    %v527 = vsel %vm152, %v525, %v523
    %v528 = vsel %vm62, %v527, 0.0
    %v529 = vsel %vm63, %v526, 0.0
    %530 = vset.pattern.permute.xlu0 8
    %531 = vperm.xlu0 %530, %v456
    %v532 = vpop.permute.xlu0 %531
    %v534 = vmul.f32 %v532, %v528
    %v535 = vmul.f32 %v532, %v529
    %v536 = vadd.f32 %v496, %v534
    %v537 = vadd.f32 %v497, %v535
    %538 = vset.pattern.permute.xlu0 9
    %539 = vperm.xlu0 %538, %v456
    %v540 = vpop.permute.xlu0 %539
    %v542 = vmul.f32 %v540, %v528
    %v543 = vmul.f32 %v540, %v529
    %v544 = vadd.f32 %v504, %v542
    %v545 = vadd.f32 %v505, %v543
    %546 = vset.pattern.permute.xlu0 10
    %547 = vperm.xlu0 %546, %v456
    %v548 = vpop.permute.xlu0 %547
    %v550 = vmul.f32 %v548, %v528
    %v551 = vmul.f32 %v548, %v529
    %v552 = vadd.f32 %v512, %v550
    %v553 = vadd.f32 %v513, %v551
    %554 = vset.pattern.permute.xlu0 11
    %555 = vperm.xlu0 %554, %v456
    %v556 = vpop.permute.xlu0 %555
    %v558 = vmul.f32 %v556, %v528
    %v559 = vmul.f32 %v556, %v529
    %v560 = vadd.f32 %v520, %v558
    %v561 = vadd.f32 %v521, %v559
    %562 = vrot.lane.b32.xlu0 %v446, 1
    %v563 = vpop.permute.xlu0 %562
    %564 = vrot.lane.b32.xlu0 %v447, 1
    %v565 = vpop.permute.xlu0 %564
    %v566 = vsel %vm193, %v563, %v565
    %v567 = vsel %vm193, %v565, %v563
    %v568 = vsel %vm56, %v567, 0.0
    %v569 = vsel %vm57, %v566, 0.0
    %570 = vset.pattern.permute.xlu0 12
    %571 = vperm.xlu0 %570, %v456
    %v572 = vpop.permute.xlu0 %571
    %v574 = vmul.f32 %v572, %v568
    %v575 = vmul.f32 %v572, %v569
    %v576 = vadd.f32 %v536, %v574
    %v577 = vadd.f32 %v537, %v575
    %578 = vset.pattern.permute.xlu0 13
    %579 = vperm.xlu0 %578, %v456
    %v580 = vpop.permute.xlu0 %579
    %v582 = vmul.f32 %v580, %v568
    %v583 = vmul.f32 %v580, %v569
    %v584 = vadd.f32 %v544, %v582
    %v585 = vadd.f32 %v545, %v583
    %586 = vset.pattern.permute.xlu0 14
    %587 = vperm.xlu0 %586, %v456
    %v588 = vpop.permute.xlu0 %587
    %v590 = vmul.f32 %v588, %v568
    %v591 = vmul.f32 %v588, %v569
    %v592 = vadd.f32 %v552, %v590
    %v593 = vadd.f32 %v553, %v591
    %594 = vset.pattern.permute.xlu0 15
    %595 = vperm.xlu0 %594, %v456
    %v596 = vpop.permute.xlu0 %595
    %v598 = vmul.f32 %v596, %v568
    %v599 = vmul.f32 %v596, %v569
    %v600 = vadd.f32 %v560, %v598
    %v601 = vadd.f32 %v561, %v599
    %602 = vset.pattern.permute.xlu0 16
    %603 = vperm.xlu0 %602, %v456
    %v604 = vpop.permute.xlu0 %603
    %v606 = vmul.f32 %v604, %v446
    %v607 = vmul.f32 %v604, %v447
    %v608 = vadd.f32 %v576, %v606
    %v609 = vadd.f32 %v577, %v607
    %610 = vset.pattern.permute.xlu0 17
    %611 = vperm.xlu0 %610, %v456
    %v612 = vpop.permute.xlu0 %611
    %v614 = vmul.f32 %v612, %v446
    %v615 = vmul.f32 %v612, %v447
    %v616 = vadd.f32 %v584, %v614
    %v617 = vadd.f32 %v585, %v615
    %618 = vset.pattern.permute.xlu0 18
    %619 = vperm.xlu0 %618, %v456
    %v620 = vpop.permute.xlu0 %619
    %v622 = vmul.f32 %v620, %v446
    %v623 = vmul.f32 %v620, %v447
    %v624 = vadd.f32 %v592, %v622
    %v625 = vadd.f32 %v593, %v623
    %626 = vset.pattern.permute.xlu0 19
    %627 = vperm.xlu0 %626, %v456
    %v628 = vpop.permute.xlu0 %627
    %v630 = vmul.f32 %v628, %v446
    %v631 = vmul.f32 %v628, %v447
    %v632 = vadd.f32 %v600, %v630
    %v633 = vadd.f32 %v601, %v631
    %634 = vrot.lane.b32.xlu0 %v446, 127
    %v635 = vpop.permute.xlu0 %634
    %636 = vrot.lane.b32.xlu0 %v447, 127
    %v637 = vpop.permute.xlu0 %636
    %v638 = vsel %vm266, %v635, %v637
    %v639 = vsel %vm266, %v637, %v635
    %v640 = vsel %vm60, %v638, 0.0
    %v641 = vsel %vm61, %v639, 0.0
    %642 = vset.pattern.permute.xlu0 20
    %643 = vperm.xlu0 %642, %v456
    %v644 = vpop.permute.xlu0 %643
    %v646 = vmul.f32 %v644, %v640
    %v647 = vmul.f32 %v644, %v641
    %v648 = vadd.f32 %v608, %v646
    %v649 = vadd.f32 %v609, %v647
    %650 = vset.pattern.permute.xlu0 21
    %651 = vperm.xlu0 %650, %v456
    %v652 = vpop.permute.xlu0 %651
    %v654 = vmul.f32 %v652, %v640
    %v655 = vmul.f32 %v652, %v641
    %v656 = vadd.f32 %v616, %v654
    %v657 = vadd.f32 %v617, %v655
    %658 = vset.pattern.permute.xlu0 22
    %659 = vperm.xlu0 %658, %v456
    %v660 = vpop.permute.xlu0 %659
    %v662 = vmul.f32 %v660, %v640
    %v663 = vmul.f32 %v660, %v641
    %v664 = vadd.f32 %v624, %v662
    %v665 = vadd.f32 %v625, %v663
    %666 = vset.pattern.permute.xlu0 23
    %667 = vperm.xlu0 %666, %v456
    %v668 = vpop.permute.xlu0 %667
    %v670 = vmul.f32 %v668, %v640
    %v671 = vmul.f32 %v668, %v641
    %v672 = vadd.f32 %v632, %v670
    %v673 = vadd.f32 %v633, %v671
    %674 = vrot.lane.b32.xlu0 %v446, 113
    %v675 = vpop.permute.xlu0 %674
    %676 = vrot.lane.b32.xlu0 %v447, 113
    %v677 = vpop.permute.xlu0 %676
    %v678 = vsel %vm307, %v675, %v677
    %v679 = vsel %vm307, %v677, %v675
    %v680 = vsel %vm66, %v678, 0.0
    %v681 = vsel %vm67, %v679, 0.0
    %682 = vset.pattern.permute.xlu0 24
    %683 = vperm.xlu0 %682, %v456
    %v684 = vpop.permute.xlu0 %683
    %v686 = vmul.f32 %v684, %v680
    %v687 = vmul.f32 %v684, %v681
    %v688 = vadd.f32 %v648, %v686
    %v689 = vadd.f32 %v649, %v687
    %690 = vset.pattern.permute.xlu0 25
    %691 = vperm.xlu0 %690, %v456
    %v692 = vpop.permute.xlu0 %691
    %v694 = vmul.f32 %v692, %v680
    %v695 = vmul.f32 %v692, %v681
    %v696 = vadd.f32 %v656, %v694
    %v697 = vadd.f32 %v657, %v695
    %698 = vset.pattern.permute.xlu0 26
    %699 = vperm.xlu0 %698, %v456
    %v700 = vpop.permute.xlu0 %699
    %v702 = vmul.f32 %v700, %v680
    %v703 = vmul.f32 %v700, %v681
    %v704 = vadd.f32 %v664, %v702
    %v705 = vadd.f32 %v665, %v703
    %706 = vset.pattern.permute.xlu0 27
    %707 = vperm.xlu0 %706, %v456
    %v708 = vpop.permute.xlu0 %707
    %v710 = vmul.f32 %v708, %v680
    %v711 = vmul.f32 %v708, %v681
    %v712 = vadd.f32 %v672, %v710
    %v713 = vadd.f32 %v673, %v711
    %714 = vrot.lane.b32.xlu0 %v446, 112
    %v715 = vpop.permute.xlu0 %714
    %716 = vrot.lane.b32.xlu0 %v447, 112
    %v717 = vpop.permute.xlu0 %716
    %v718 = vsel %vm348, %v715, %v717
    %v719 = vsel %vm348, %v717, %v715
    %v720 = vsel %vm64, %v718, 0.0
    %v721 = vsel %vm65, %v719, 0.0
    %722 = vset.pattern.permute.xlu0 28
    %723 = vperm.xlu0 %722, %v456
    %v724 = vpop.permute.xlu0 %723
    %v726 = vmul.f32 %v724, %v720
    %v727 = vmul.f32 %v724, %v721
    %v728 = vadd.f32 %v688, %v726
    %v729 = vadd.f32 %v689, %v727
    %730 = vset.pattern.permute.xlu0 29
    %731 = vperm.xlu0 %730, %v456
    %v732 = vpop.permute.xlu0 %731
    %v734 = vmul.f32 %v732, %v720
    %v735 = vmul.f32 %v732, %v721
    %v736 = vadd.f32 %v696, %v734
    %v737 = vadd.f32 %v697, %v735
    %738 = vset.pattern.permute.xlu0 30
    %739 = vperm.xlu0 %738, %v456
    %v740 = vpop.permute.xlu0 %739
    %v742 = vmul.f32 %v740, %v720
    %v743 = vmul.f32 %v740, %v721
    %v744 = vadd.f32 %v704, %v742
    %v745 = vadd.f32 %v705, %v743
    %746 = vset.pattern.permute.xlu0 31
    %747 = vperm.xlu0 %746, %v456
    %v748 = vpop.permute.xlu0 %747
    %v750 = vmul.f32 %v748, %v720
    %v751 = vmul.f32 %v748, %v721
    %v752 = vadd.f32 %v712, %v750
    %v753 = vadd.f32 %v713, %v751
    %754 = vrot.lane.b32.xlu0 %v446, 111
    %v755 = vpop.permute.xlu0 %754
    %756 = vrot.lane.b32.xlu0 %v447, 111
    %v757 = vpop.permute.xlu0 %756
    %v758 = vsel %vm389, %v755, %v757
    %v759 = vsel %vm389, %v757, %v755
    %v760 = vsel %vm68, %v758, 0.0
    %v761 = vsel %vm69, %v759, 0.0
    %762 = vset.pattern.permute.xlu0 32
    %763 = vperm.xlu0 %762, %v456
    %v764 = vpop.permute.xlu0 %763
    %v766 = vmul.f32 %v764, %v760
    %v767 = vmul.f32 %v764, %v761
    %v768 = vadd.f32 %v728, %v766
    %v769 = vadd.f32 %v729, %v767
    %770 = vset.pattern.permute.xlu0 33
    %771 = vperm.xlu0 %770, %v456
    %v772 = vpop.permute.xlu0 %771
    %v774 = vmul.f32 %v772, %v760
    %v775 = vmul.f32 %v772, %v761
    %v776 = vadd.f32 %v736, %v774
    %v777 = vadd.f32 %v737, %v775
    %778 = vset.pattern.permute.xlu0 34
    %779 = vperm.xlu0 %778, %v456
    %v780 = vpop.permute.xlu0 %779
    %v782 = vmul.f32 %v780, %v760
    %v783 = vmul.f32 %v780, %v761
    %v784 = vadd.f32 %v744, %v782
    %v785 = vadd.f32 %v745, %v783
    %786 = vset.pattern.permute.xlu0 35
    %787 = vperm.xlu0 %786, %v456
    %v788 = vpop.permute.xlu0 %787
    %v790 = vmul.f32 %v788, %v760
    %v791 = vmul.f32 %v788, %v761
    %v792 = vadd.f32 %v752, %v790
    %v793 = vadd.f32 %v753, %v791
    %v794 = vrot.slane %v776, 6
    %v795 = vrot.slane %v777, 6
    %v796 = vadd.f32 %v768, %v794
    %v797 = vadd.f32 %v769, %v795
    %v798 = vrot.slane %v784, 4
    %v799 = vrot.slane %v785, 4
    %v800 = vadd.f32 %v796, %v798
    %v801 = vadd.f32 %v797, %v799
    %v802 = vrot.slane %v792, 2
    %v803 = vrot.slane %v793, 2
    %v804 = vadd.f32 %v800, %v802
    %v805 = vadd.f32 %v801, %v803
    %v806 = vld [vmem:[%s4] sm:$0xff]
    %808 = vset.pattern.permute.xlu0 0
    %809 = vperm.xlu0 %808, %v806
    %v810 = vpop.permute.xlu0 %809
    %v812 = vadd.f32 %v804, %v810
    %v813 = vadd.f32 %v805, %v810
    %v814 = vadd.f32 %v70, %v812
    %v815 = vadd.f32 %v71, %v813
    %v816 = vmax.f32 %v814, 0.0
    %v817 = vmax.f32 %v815, 0.0
    %818 = vst [vmem:[#allocation7] sm:$0xff] %v816
    %819 = vst [vmem:[#allocation7 + $0x8] sm:$0xff] %v817
    // Predicated region
    $region30: #{tpu_custom_call.1} parent=1 // pred_check
      _
    $region31: #{tpu_custom_call.1} parent=1 // pred_check_branch
      %821 = sbr.rel (0) target = $region33
    $region32: #{tpu_custom_call.1} parent=1 // pred_region
      %823 = vsyncadd [#allocation4], 0
      %s825 = sshll.u32 [#allocation7], 4
      %s826 = int_to_ptr.vmem [resolvable:$true] %s825
      %s827 = sshll.u32 %s5, 4
      %s828 = int_to_ptr.hbm [resolvable:$true] %s827
      %830 = dma.vmem_to_hbm [thread:$0]  %s826, 256, %s828, [#allocation4]
    $region33: #{tpu_custom_call.1} parent=1 // pred_fallthru
      _
    // Predicated region
    $region34: #{tpu_custom_call.1} parent=1 // pred_check
      _
    $region35: #{tpu_custom_call.1} parent=1 // pred_check_branch
      %832 = sbr.rel (0) target = $region37
    $region36: #{tpu_custom_call.1} parent=1 // pred_region
      %834 = dma.done [#allocation4], 256
    $region37: #{tpu_custom_call.1} parent=1 // pred_fallthru
      _
    %835 = vsyncpa [#allocation3], 1
    %836 = vsyncpa [#allocation6], 1
    %837 = vsyncpa [#allocation4], 1

</llo_original>
